<compile_context>
chip_gen: v7x
topology: tpu7x:2x2x1
jax: 0.10.0
libtpu: 0.0.40
codegen_flags: <defaults>
</compile_context>

<pallas_src>
import functools

import jax
import jax.numpy as jnp
from jax.experimental import pallas as pl
from jax.experimental.pallas import tpu as pltpu

_LANES = 128
_SUBLANES = 8

_K1, _S1 = 8, 4            # conv1 kernel / stride
_K2, _S2 = 4, 2            # conv2 kernel / stride
_C1 = 16                   # conv1 out channels
_C2 = 32                   # conv2 out channels
_FC1 = 256                 # fc1 out features
_NK2 = _K2 * _K2           # conv2 kernel positions (16)


def _round_up(x, m):
    return (x + m - 1) // m * m


def _conv_out(n, k, s):
    return (n - k) // s + 1


# ----------------------------- Pallas kernel ------------------------------- #

def _fused_cnn_kernel(p1_ref, w1_ref, b1_ref, w2_ref, b2_ref,
                      w3_ref, b3_ref, w4_ref, b4_ref,
                      o_ref, patch_scr, hin_scr, *, bt, npos2, nk2):
    """One batch tile of the whole forward; everything stays in VMEM/vregs.

    p1   : (nk2*npos2*bt, KH1*KW1*C) bf16  conv1 patches, rows = (g, pos, b)
    w1   : (KH1*KW1*C, 16)           bf16
    w2   : (nk2*16, 32)              bf16  conv2 weights, rows = (g, cin)
    w3   : (npos2*32, 256)           bf16  fc1 weights, rows = (pos, cin)
                                           (NCHW flatten order pre-folded)
    w4   : (256, Npad)               bf16  fc2 weights, lane-padded to 128
    b*   : (1, N)                    f32
    out  : (bt, Npad)                f32
    patch_scr : (npos2*bt, nk2*16)   f32   conv2 im2col staging (VMEM)
    hin_scr   : (bt, npos2*32)       f32   fc1 input staging (VMEM)
    """
    f32 = jnp.float32
    bf16 = jnp.bfloat16
    c1 = w1_ref.shape[1]               # 16
    c2 = w2_ref.shape[1]               # 32
    rb = npos2 * bt                    # rows per kernel-position block

    # conv1: ONE GEMM over all (kernel-pos, spatial-pos, image) rows of the tile.
    y1 = jnp.dot(p1_ref[...], w1_ref[...], preferred_element_type=f32)
    y1 = jnp.maximum(y1 + b1_ref[...], 0.0)

    # conv2 im2col: pack each kernel-position row block into its lane block.
    # Pure static masked stores -- no MXU pushes, no VALU accumulation.
    for g in range(nk2):
        patch_scr[:, g * c1:(g + 1) * c1] = y1[g * rb:(g + 1) * rb, :]

    # conv2: ONE dense GEMM, K = nk2 * 16 = 256 (accumulation inside the MXU).
    y2 = jnp.dot(patch_scr[...].astype(bf16), w2_ref[...],
                 preferred_element_type=f32)
    y2 = jnp.maximum(y2 + b2_ref[...], 0.0)

    # NCHW flatten (order folded into w3): pack spatial positions into lanes.
    for pos in range(npos2):
        hin_scr[:, pos * c2:(pos + 1) * c2] = y2[pos * bt:(pos + 1) * bt, :]

    # fc1: ONE GEMM, K = npos2 * 32 = 128.
    h = jnp.dot(hin_scr[...].astype(bf16), w3_ref[...],
                preferred_element_type=f32)
    h = jnp.maximum(h + b3_ref[...], 0.0)

    # fc2: lane-dense (bt, 128) output; sliced to n_actions in the wrapper.
    o_ref[...] = (jnp.dot(h.astype(bf16), w4_ref[...],
                          preferred_element_type=f32) + b4_ref[...])


def _call_fused(prep, p1, *, bt, n_tiles, npos2):
    k1 = prep["w1"].shape[0]
    n_pad = prep["w4"].shape[-1]
    k2 = prep["w2"].shape[0]           # nk2 * 16
    k3 = prep["w3"].shape[0]           # npos2 * 32

    kernel = functools.partial(_fused_cnn_kernel,
                               bt=bt, npos2=npos2, nk2=_NK2)
    const = lambda t: (0, 0)

    grid_spec = pltpu.PrefetchScalarGridSpec(
        num_scalar_prefetch=0,
        grid=(n_tiles,),
        in_specs=[
            pl.BlockSpec((_NK2 * npos2 * bt, k1), lambda t: (t, 0)),  # p1 tile
            pl.BlockSpec(prep["w1"].shape, const),   # weights: constant index
            pl.BlockSpec(prep["b1"].shape, const),   # maps => stay resident
            pl.BlockSpec(prep["w2"].shape, const),
            pl.BlockSpec(prep["b2"].shape, const),
            pl.BlockSpec(prep["w3"].shape, const),
            pl.BlockSpec(prep["b3"].shape, const),
            pl.BlockSpec(prep["w4"].shape, const),
            pl.BlockSpec(prep["b4"].shape, const),
        ],
        out_specs=pl.BlockSpec((bt, n_pad), lambda t: (t, 0)),
        scratch_shapes=[
            pltpu.VMEM((npos2 * bt, k2), jnp.float32),   # conv2 im2col staging
            pltpu.VMEM((bt, k3), jnp.float32),           # fc1 input staging
        ],
    )
    return pl.pallas_call(
        kernel,
        out_shape=jax.ShapeDtypeStruct((n_tiles * bt, n_pad), jnp.float32),
        grid_spec=grid_spec,
        compiler_params=pltpu.CompilerParams(
            dimension_semantics=("parallel",)),      # megacore / v7x 2-TC split
    )(p1, prep["w1"], prep["b1"], prep["w2"], prep["b2"],
      prep["w3"], prep["b3"], prep["w4"], prep["b4"])


# ------------------------------- JAX glue ---------------------------------- #

def _im2col_conv1(x, oh1, ow1):
    """x: (B,H,W,C) bf16 -> (B, oh1, ow1, KH1*KW1*C); patch order (kh, kw, c)."""
    B, H, W, C = x.shape
    cols = []
    for i in range(_K1):
        for j in range(_K1):
            cols.append(jax.lax.slice(
                x, (0, i, j, 0),
                (B, i + _S1 * (oh1 - 1) + 1, j + _S1 * (ow1 - 1) + 1, C),
                (1, _S1, _S1, 1)))
    patches = jnp.stack(cols, axis=3)              # (B, oh1, ow1, KH*KW, C)
    return patches.reshape(B, oh1, ow1, _K1 * _K1 * C)


def _dup_for_conv2(p, oh2, ow2):
    """(B, oh1, ow1, K) -> (B, oh2, ow2, nk2, K): conv1 patches duplicated to
    conv2 patch granularity; kernel-position order g = ki*KW2 + kj."""
    B = p.shape[0]
    K = p.shape[-1]
    pieces = []
    for ki in range(_K2):
        for kj in range(_K2):
            pieces.append(jax.lax.slice(
                p, (0, ki, kj, 0),
                (B, ki + _S2 * (oh2 - 1) + 1, kj + _S2 * (ow2 - 1) + 1, K),
                (1, _S2, _S2, 1)))
    return jnp.stack(pieces, axis=3)               # (B, oh2, ow2, nk2, K)


def init_params(key, state_size, n_actions):
    """Deterministic synthetic params in PyTorch layouts (OIHW / (out,in))."""
    H, W, C = state_size
    oh1, ow1 = _conv_out(H, _K1, _S1), _conv_out(W, _K1, _S1)
    oh2, ow2 = _conv_out(oh1, _K2, _S2), _conv_out(ow1, _K2, _S2)
    dense_in = _C2 * oh2 * ow2

    ks = jax.random.split(key, 8)

    def u(k, shape, fan_in):
        bound = 1.0 / jnp.sqrt(fan_in)
        return jax.random.uniform(k, shape, jnp.float32, -bound, bound)

    return {
        "conv1_w": u(ks[0], (_C1, C, _K1, _K1), C * _K1 * _K1),      # OIHW
        "conv1_b": u(ks[1], (_C1,), C * _K1 * _K1),
        "conv2_w": u(ks[2], (_C2, _C1, _K2, _K2), _C1 * _K2 * _K2),  # OIHW
        "conv2_b": u(ks[3], (_C2,), _C1 * _K2 * _K2),
        "fc1_w": u(ks[4], (_FC1, dense_in), dense_in),               # (out, in)
        "fc1_b": u(ks[5], (_FC1,), dense_in),
        "fc2_w": u(ks[6], (n_actions, _FC1), _FC1),                  # (out, in)
        "fc2_b": u(ks[7], (n_actions,), _FC1),
    }


def prepare_params(params, state_size, n_actions):
    """One-time layout work (batch-size independent): bf16 GEMM-ready weights,
    (1,N) f32 biases, flatten-folded fc1, lane-padded fc2."""
    H, W, C = state_size
    oh1, ow1 = _conv_out(H, _K1, _S1), _conv_out(W, _K1, _S1)
    oh2, ow2 = _conv_out(oh1, _K2, _S2), _conv_out(ow1, _K2, _S2)
    npos2 = oh2 * ow2

    n_pad = _round_up(n_actions, _LANES)
    w4 = jnp.zeros((_FC1, n_pad), jnp.float32).at[:, :n_actions].set(
        params["fc2_w"].T)
    b4 = jnp.zeros((1, n_pad), jnp.float32).at[:, :n_actions].set(
        params["fc2_b"])

    return {
        # conv1: (KH*KW*C, 16), rows ordered (kh, kw, c) to match the im2col.
        "w1": jnp.transpose(params["conv1_w"], (2, 3, 1, 0))
                 .reshape(_K1 * _K1 * C, _C1).astype(jnp.bfloat16),
        "b1": params["conv1_b"].reshape(1, -1).astype(jnp.float32),
        # conv2: flattened to (nk2*16, 32), rows ordered (ki, kj, cin).
        "w2": jnp.transpose(params["conv2_w"], (2, 3, 1, 0))
                 .reshape(_NK2 * _C1, _C2).astype(jnp.bfloat16),
        "b2": params["conv2_b"].reshape(1, -1).astype(jnp.float32),
        # fc1: (npos2*32, 256), rows ordered (pos, cin); NCHW flatten folded.
        "w3": jnp.transpose(params["fc1_w"].reshape(_FC1, _C2, npos2),
                            (2, 1, 0)).reshape(npos2 * _C2, _FC1)
                 .astype(jnp.bfloat16),
        "b3": params["fc1_b"].reshape(1, -1).astype(jnp.float32),
        # fc2: lane-padded to 128 output columns.
        "w4": w4.astype(jnp.bfloat16),
        "b4": b4,
    }


def cnn_forward(prep, state, *, n_actions, batch_tile=None):
    """Pallas-backed forward, semantically equal to CNNNetwork.forward."""
    if state.ndim != 4:
        raise ValueError(f"Invalid shape, got {state.shape}")
    B, H, W, C = state.shape
    oh1, ow1 = _conv_out(H, _K1, _S1), _conv_out(W, _K1, _S1)
    oh2, ow2 = _conv_out(oh1, _K2, _S2), _conv_out(ow1, _K2, _S2)
    npos2 = oh2 * ow2
    k1 = _K1 * _K1 * C

    # Coarse batch tiles (multiple of 8 sublanes); pad the batch up to a tile.
    bt = batch_tile if batch_tile is not None else min(_round_up(B, _SUBLANES), 64)
    bt = _round_up(bt, _SUBLANES)
    n_tiles = -(-B // bt)
    b_pad = n_tiles * bt

    x = state.astype(jnp.bfloat16)          # bf16 before im2col slicing/stacking
    if b_pad > B:
        x = jnp.pad(x, ((0, b_pad - B), (0, 0), (0, 0), (0, 0)))

    patches1 = _im2col_conv1(x, oh1, ow1)                 # (b_pad, oh1, ow1, k1)
    dup = _dup_for_conv2(patches1, oh2, ow2)              # (b_pad, oh2, ow2, nk2, k1)
    # Tile-major row order (tile, g, pos, b_local): each grid step gets one
    # contiguous (nk2*npos2*bt, k1) block, and per-g / per-pos slices inside
    # the kernel stay 8-row aligned.
    p1 = (dup.reshape(n_tiles, bt, npos2, _NK2, k1)
             .transpose(0, 3, 2, 1, 4)
             .reshape(n_tiles * _NK2 * npos2 * bt, k1))

    out = _call_fused(prep, p1, bt=bt, n_tiles=n_tiles, npos2=npos2)
    return out[:B, :n_actions]


def reference_forward(params, state):
    """Pure-JAX/XLA reference mirroring the PyTorch graph (NCHW convs)."""
    x = jnp.transpose(state, (0, 3, 1, 2))
    dn = ("NCHW", "OIHW", "NCHW")
    y = jax.lax.conv_general_dilated(
        x, params["conv1_w"], (_S1, _S1), "VALID", dimension_numbers=dn,
        precision=jax.lax.Precision.HIGHEST)
    y = jnp.maximum(y + params["conv1_b"][None, :, None, None], 0.0)
    y = jax.lax.conv_general_dilated(
        y, params["conv2_w"], (_S2, _S2), "VALID", dimension_numbers=dn,
        precision=jax.lax.Precision.HIGHEST)
    y = jnp.maximum(y + params["conv2_b"][None, :, None, None], 0.0)
    flat = y.reshape(y.shape[0], -1)
    h = jnp.maximum(flat @ params["fc1_w"].T + params["fc1_b"], 0.0)
    return h @ params["fc2_w"].T + params["fc2_b"]


# --------------------------------- main ------------------------------------ #

if __name__ == "__main__":
    state_size = (32, 32, 4)   # (H, W, C); state_size[-1] = input channels
    n_actions = 6              # action_space.n
    batch = 2

    key = jax.random.PRNGKey(0)
    k_params, k_state = jax.random.split(key)
    params = init_params(k_params, state_size, n_actions)
    state = jax.random.uniform(k_state, (batch, *state_size), jnp.float32)

    prep = prepare_params(params, state_size, n_actions)   # batch-agnostic
    fwd = jax.jit(functools.partial(cnn_forward, n_actions=n_actions))

    out = jax.block_until_ready(fwd(prep, state))
    assert out.shape == (batch, n_actions), out.shape

    ref = jax.block_until_ready(reference_forward(params, state))
    err = float(jnp.max(jnp.abs(out - ref)))
    assert jnp.allclose(out, ref, rtol=2e-2, atol=2e-2), err

    # Prepared params no longer bake in a batch size: reuse them at another B.
    state5 = jax.random.uniform(jax.random.PRNGKey(1), (5, *state_size),
                                jnp.float32)
    out5 = jax.block_until_ready(fwd(prep, state5))
    ref5 = reference_forward(params, state5)
    assert out5.shape == (5, n_actions), out5.shape
    err5 = float(jnp.max(jnp.abs(out5 - ref5)))
    assert jnp.allclose(out5, ref5, rtol=2e-2, atol=2e-2), err5

    print("KERNEL_OK")
</pallas_src>

<mosaic_0001>
module attributes {stable_mosaic.version = 11 : i64} {
  func.func @_fused_cnn_kernel(%arg0: i32, %arg1: memref<512x256xbf16, #tpu.memory_space<vmem>>, %arg2: memref<256x16xbf16, #tpu.memory_space<vmem>>, %arg3: memref<1x16xf32, #tpu.memory_space<vmem>>, %arg4: memref<256x32xbf16, #tpu.memory_space<vmem>>, %arg5: memref<1x32xf32, #tpu.memory_space<vmem>>, %arg6: memref<128x256xbf16, #tpu.memory_space<vmem>>, %arg7: memref<1x256xf32, #tpu.memory_space<vmem>>, %arg8: memref<256x128xbf16, #tpu.memory_space<vmem>>, %arg9: memref<1x128xf32, #tpu.memory_space<vmem>>, %arg10: memref<8x128xf32, #tpu.memory_space<vmem>>, %arg11: memref<32x256xf32, #tpu.memory_space<vmem>>, %arg12: memref<8x128xf32, #tpu.memory_space<vmem>>) attributes {dimension_semantics = [#tpu.dimension_semantics<parallel>], iteration_bounds = array<i64: 1>, scalar_prefetch = 0 : i64, scratch_operands = 2 : i64, tpu.core_type = #tpu.core_type<tc>, window_params = [{transform_indices = @transform_0, window_bounds = array<i64: 512, 256>}, {pipeline_mode = #tpu.pipeline_mode<synchronous>, transform_indices = @transform_1, window_bounds = array<i64: 256, 16>}, {pipeline_mode = #tpu.pipeline_mode<synchronous>, transform_indices = @transform_2, window_bounds = array<i64: 1, 16>}, {pipeline_mode = #tpu.pipeline_mode<synchronous>, transform_indices = @transform_3, window_bounds = array<i64: 256, 32>}, {pipeline_mode = #tpu.pipeline_mode<synchronous>, transform_indices = @transform_4, window_bounds = array<i64: 1, 32>}, {pipeline_mode = #tpu.pipeline_mode<synchronous>, transform_indices = @transform_5, window_bounds = array<i64: 128, 256>}, {pipeline_mode = #tpu.pipeline_mode<synchronous>, transform_indices = @transform_6, window_bounds = array<i64: 1, 256>}, {pipeline_mode = #tpu.pipeline_mode<synchronous>, transform_indices = @transform_7, window_bounds = array<i64: 256, 128>}, {pipeline_mode = #tpu.pipeline_mode<synchronous>, transform_indices = @transform_8, window_bounds = array<i64: 1, 128>}, {transform_indices = @transform_9, window_bounds = array<i64: 8, 128>}]} {
    %c0 = arith.constant 0 : index
    %c0_0 = arith.constant 0 : index
    %0 = vector.load %arg1[%c0, %c0_0] : memref<512x256xbf16, #tpu.memory_space<vmem>>, vector<512x256xbf16>
    %c0_1 = arith.constant 0 : index
    %c0_2 = arith.constant 0 : index
    %1 = vector.load %arg2[%c0_1, %c0_2] : memref<256x16xbf16, #tpu.memory_space<vmem>>, vector<256x16xbf16>
    %cst = arith.constant dense<0.000000e+00> : vector<512x16xf32>
    %2 = tpu.matmul %0, %1, %cst {dimension_numbers = #tpu.dot_dimension_numbers<[1], [0], [0], [1], [0, 0, 1, 1], [], []>} : vector<512x256xbf16>, vector<256x16xbf16>, vector<512x16xf32> -> vector<512x16xf32>
    %c0_3 = arith.constant 0 : index
    %c0_4 = arith.constant 0 : index
    %3 = vector.load %arg3[%c0_3, %c0_4] : memref<1x16xf32, #tpu.memory_space<vmem>>, vector<1x16xf32>
    %4 = vector.broadcast %3 : vector<1x16xf32> to vector<512x16xf32>
    %5 = arith.addf %2, %4 : vector<512x16xf32>
    %cst_5 = arith.constant 0.000000e+00 : f32
    %6 = vector.broadcast %cst_5 : f32 to vector<512x16xf32>
    %7 = arith.maximumf %5, %6 : vector<512x16xf32>
    %8 = vector.extract_strided_slice %7 {offsets = [0, 0], sizes = [32, 16], strides = [1, 1]} : vector<512x16xf32> to vector<32x16xf32>
    %c0_6 = arith.constant 0 : index
    %c0_7 = arith.constant 0 : index
    %9 = vector.load %arg11[%c0_6, %c0_7] : memref<32x256xf32, #tpu.memory_space<vmem>>, vector<32x16xf32>
    tpu.vector_store %arg11[%c0_6, %c0_7], %8 {strides = array<i32>} : memref<32x256xf32, #tpu.memory_space<vmem>>, vector<32x16xf32>,
    %10 = vector.extract_strided_slice %7 {offsets = [32, 0], sizes = [32, 16], strides = [1, 1]} : vector<512x16xf32> to vector<32x16xf32>
    %c0_8 = arith.constant 0 : index
    %c16 = arith.constant 16 : index
    %11 = vector.load %arg11[%c0_8, %c16] : memref<32x256xf32, #tpu.memory_space<vmem>>, vector<32x16xf32>
    tpu.vector_store %arg11[%c0_8, %c16], %10 {strides = array<i32>} : memref<32x256xf32, #tpu.memory_space<vmem>>, vector<32x16xf32>,
    %12 = vector.extract_strided_slice %7 {offsets = [64, 0], sizes = [32, 16], strides = [1, 1]} : vector<512x16xf32> to vector<32x16xf32>
    %c0_9 = arith.constant 0 : index
    %c32 = arith.constant 32 : index
    %13 = vector.load %arg11[%c0_9, %c32] : memref<32x256xf32, #tpu.memory_space<vmem>>, vector<32x16xf32>
    tpu.vector_store %arg11[%c0_9, %c32], %12 {strides = array<i32>} : memref<32x256xf32, #tpu.memory_space<vmem>>, vector<32x16xf32>,
    %14 = vector.extract_strided_slice %7 {offsets = [96, 0], sizes = [32, 16], strides = [1, 1]} : vector<512x16xf32> to vector<32x16xf32>
    %c0_10 = arith.constant 0 : index
    %c48 = arith.constant 48 : index
    %15 = vector.load %arg11[%c0_10, %c48] : memref<32x256xf32, #tpu.memory_space<vmem>>, vector<32x16xf32>
    tpu.vector_store %arg11[%c0_10, %c48], %14 {strides = array<i32>} : memref<32x256xf32, #tpu.memory_space<vmem>>, vector<32x16xf32>,
    %16 = vector.extract_strided_slice %7 {offsets = [128, 0], sizes = [32, 16], strides = [1, 1]} : vector<512x16xf32> to vector<32x16xf32>
    %c0_11 = arith.constant 0 : index
    %c64 = arith.constant 64 : index
    %17 = vector.load %arg11[%c0_11, %c64] : memref<32x256xf32, #tpu.memory_space<vmem>>, vector<32x16xf32>
    tpu.vector_store %arg11[%c0_11, %c64], %16 {strides = array<i32>} : memref<32x256xf32, #tpu.memory_space<vmem>>, vector<32x16xf32>,
    %18 = vector.extract_strided_slice %7 {offsets = [160, 0], sizes = [32, 16], strides = [1, 1]} : vector<512x16xf32> to vector<32x16xf32>
    %c0_12 = arith.constant 0 : index
    %c80 = arith.constant 80 : index
    %19 = vector.load %arg11[%c0_12, %c80] : memref<32x256xf32, #tpu.memory_space<vmem>>, vector<32x16xf32>
    tpu.vector_store %arg11[%c0_12, %c80], %18 {strides = array<i32>} : memref<32x256xf32, #tpu.memory_space<vmem>>, vector<32x16xf32>,
    %20 = vector.extract_strided_slice %7 {offsets = [192, 0], sizes = [32, 16], strides = [1, 1]} : vector<512x16xf32> to vector<32x16xf32>
    %c0_13 = arith.constant 0 : index
    %c96 = arith.constant 96 : index
    %21 = vector.load %arg11[%c0_13, %c96] : memref<32x256xf32, #tpu.memory_space<vmem>>, vector<32x16xf32>
    tpu.vector_store %arg11[%c0_13, %c96], %20 {strides = array<i32>} : memref<32x256xf32, #tpu.memory_space<vmem>>, vector<32x16xf32>,
    %22 = vector.extract_strided_slice %7 {offsets = [224, 0], sizes = [32, 16], strides = [1, 1]} : vector<512x16xf32> to vector<32x16xf32>
    %c0_14 = arith.constant 0 : index
    %c112 = arith.constant 112 : index
    %23 = vector.load %arg11[%c0_14, %c112] : memref<32x256xf32, #tpu.memory_space<vmem>>, vector<32x16xf32>
    tpu.vector_store %arg11[%c0_14, %c112], %22 {strides = array<i32>} : memref<32x256xf32, #tpu.memory_space<vmem>>, vector<32x16xf32>,
    %24 = vector.extract_strided_slice %7 {offsets = [256, 0], sizes = [32, 16], strides = [1, 1]} : vector<512x16xf32> to vector<32x16xf32>
    %c0_15 = arith.constant 0 : index
    %c128 = arith.constant 128 : index
    %25 = vector.load %arg11[%c0_15, %c128] : memref<32x256xf32, #tpu.memory_space<vmem>>, vector<32x16xf32>
    tpu.vector_store %arg11[%c0_15, %c128], %24 {strides = array<i32>} : memref<32x256xf32, #tpu.memory_space<vmem>>, vector<32x16xf32>,
    %26 = vector.extract_strided_slice %7 {offsets = [288, 0], sizes = [32, 16], strides = [1, 1]} : vector<512x16xf32> to vector<32x16xf32>
    %c0_16 = arith.constant 0 : index
    %c144 = arith.constant 144 : index
    %27 = vector.load %arg11[%c0_16, %c144] : memref<32x256xf32, #tpu.memory_space<vmem>>, vector<32x16xf32>
    tpu.vector_store %arg11[%c0_16, %c144], %26 {strides = array<i32>} : memref<32x256xf32, #tpu.memory_space<vmem>>, vector<32x16xf32>,
    %28 = vector.extract_strided_slice %7 {offsets = [320, 0], sizes = [32, 16], strides = [1, 1]} : vector<512x16xf32> to vector<32x16xf32>
    %c0_17 = arith.constant 0 : index
    %c160 = arith.constant 160 : index
    %29 = vector.load %arg11[%c0_17, %c160] : memref<32x256xf32, #tpu.memory_space<vmem>>, vector<32x16xf32>
    tpu.vector_store %arg11[%c0_17, %c160], %28 {strides = array<i32>} : memref<32x256xf32, #tpu.memory_space<vmem>>, vector<32x16xf32>,
    %30 = vector.extract_strided_slice %7 {offsets = [352, 0], sizes = [32, 16], strides = [1, 1]} : vector<512x16xf32> to vector<32x16xf32>
    %c0_18 = arith.constant 0 : index
    %c176 = arith.constant 176 : index
    %31 = vector.load %arg11[%c0_18, %c176] : memref<32x256xf32, #tpu.memory_space<vmem>>, vector<32x16xf32>
    tpu.vector_store %arg11[%c0_18, %c176], %30 {strides = array<i32>} : memref<32x256xf32, #tpu.memory_space<vmem>>, vector<32x16xf32>,
    %32 = vector.extract_strided_slice %7 {offsets = [384, 0], sizes = [32, 16], strides = [1, 1]} : vector<512x16xf32> to vector<32x16xf32>
    %c0_19 = arith.constant 0 : index
    %c192 = arith.constant 192 : index
    %33 = vector.load %arg11[%c0_19, %c192] : memref<32x256xf32, #tpu.memory_space<vmem>>, vector<32x16xf32>
    tpu.vector_store %arg11[%c0_19, %c192], %32 {strides = array<i32>} : memref<32x256xf32, #tpu.memory_space<vmem>>, vector<32x16xf32>,
    %34 = vector.extract_strided_slice %7 {offsets = [416, 0], sizes = [32, 16], strides = [1, 1]} : vector<512x16xf32> to vector<32x16xf32>
    %c0_20 = arith.constant 0 : index
    %c208 = arith.constant 208 : index
    %35 = vector.load %arg11[%c0_20, %c208] : memref<32x256xf32, #tpu.memory_space<vmem>>, vector<32x16xf32>
    tpu.vector_store %arg11[%c0_20, %c208], %34 {strides = array<i32>} : memref<32x256xf32, #tpu.memory_space<vmem>>, vector<32x16xf32>,
    %36 = vector.extract_strided_slice %7 {offsets = [448, 0], sizes = [32, 16], strides = [1, 1]} : vector<512x16xf32> to vector<32x16xf32>
    %c0_21 = arith.constant 0 : index
    %c224 = arith.constant 224 : index
    %37 = vector.load %arg11[%c0_21, %c224] : memref<32x256xf32, #tpu.memory_space<vmem>>, vector<32x16xf32>
    tpu.vector_store %arg11[%c0_21, %c224], %36 {strides = array<i32>} : memref<32x256xf32, #tpu.memory_space<vmem>>, vector<32x16xf32>,
    %38 = vector.extract_strided_slice %7 {offsets = [480, 0], sizes = [32, 16], strides = [1, 1]} : vector<512x16xf32> to vector<32x16xf32>
    %c0_22 = arith.constant 0 : index
    %c240 = arith.constant 240 : index
    %39 = vector.load %arg11[%c0_22, %c240] : memref<32x256xf32, #tpu.memory_space<vmem>>, vector<32x16xf32>
    tpu.vector_store %arg11[%c0_22, %c240], %38 {strides = array<i32>} : memref<32x256xf32, #tpu.memory_space<vmem>>, vector<32x16xf32>,
    %c0_23 = arith.constant 0 : index
    %c0_24 = arith.constant 0 : index
    %40 = vector.load %arg11[%c0_23, %c0_24] : memref<32x256xf32, #tpu.memory_space<vmem>>, vector<32x256xf32>
    %41 = arith.truncf %40 : vector<32x256xf32> to vector<32x256xbf16>
    %c0_25 = arith.constant 0 : index
    %c0_26 = arith.constant 0 : index
    %42 = vector.load %arg4[%c0_25, %c0_26] : memref<256x32xbf16, #tpu.memory_space<vmem>>, vector<256x32xbf16>
    %cst_27 = arith.constant dense<0.000000e+00> : vector<32x32xf32>
    %43 = tpu.matmul %41, %42, %cst_27 {dimension_numbers = #tpu.dot_dimension_numbers<[1], [0], [0], [1], [0, 0, 1, 1], [], []>} : vector<32x256xbf16>, vector<256x32xbf16>, vector<32x32xf32> -> vector<32x32xf32>
    %c0_28 = arith.constant 0 : index
    %c0_29 = arith.constant 0 : index
    %44 = vector.load %arg5[%c0_28, %c0_29] : memref<1x32xf32, #tpu.memory_space<vmem>>, vector<1x32xf32>
    %45 = vector.broadcast %44 : vector<1x32xf32> to vector<32x32xf32>
    %46 = arith.addf %43, %45 : vector<32x32xf32>
    %cst_30 = arith.constant 0.000000e+00 : f32
    %47 = vector.broadcast %cst_30 : f32 to vector<32x32xf32>
    %48 = arith.maximumf %46, %47 : vector<32x32xf32>
    %49 = vector.extract_strided_slice %48 {offsets = [0, 0], sizes = [8, 32], strides = [1, 1]} : vector<32x32xf32> to vector<8x32xf32>
    %c0_31 = arith.constant 0 : index
    %c0_32 = arith.constant 0 : index
    %50 = vector.load %arg12[%c0_31, %c0_32] : memref<8x128xf32, #tpu.memory_space<vmem>>, vector<8x32xf32>
    tpu.vector_store %arg12[%c0_31, %c0_32], %49 {strides = array<i32>} : memref<8x128xf32, #tpu.memory_space<vmem>>, vector<8x32xf32>,
    %51 = vector.extract_strided_slice %48 {offsets = [8, 0], sizes = [8, 32], strides = [1, 1]} : vector<32x32xf32> to vector<8x32xf32>
    %c0_33 = arith.constant 0 : index
    %c32_34 = arith.constant 32 : index
    %52 = vector.load %arg12[%c0_33, %c32_34] : memref<8x128xf32, #tpu.memory_space<vmem>>, vector<8x32xf32>
    tpu.vector_store %arg12[%c0_33, %c32_34], %51 {strides = array<i32>} : memref<8x128xf32, #tpu.memory_space<vmem>>, vector<8x32xf32>,
    %53 = vector.extract_strided_slice %48 {offsets = [16, 0], sizes = [8, 32], strides = [1, 1]} : vector<32x32xf32> to vector<8x32xf32>
    %c0_35 = arith.constant 0 : index
    %c64_36 = arith.constant 64 : index
    %54 = vector.load %arg12[%c0_35, %c64_36] : memref<8x128xf32, #tpu.memory_space<vmem>>, vector<8x32xf32>
    tpu.vector_store %arg12[%c0_35, %c64_36], %53 {strides = array<i32>} : memref<8x128xf32, #tpu.memory_space<vmem>>, vector<8x32xf32>,
    %55 = vector.extract_strided_slice %48 {offsets = [24, 0], sizes = [8, 32], strides = [1, 1]} : vector<32x32xf32> to vector<8x32xf32>
    %c0_37 = arith.constant 0 : index
    %c96_38 = arith.constant 96 : index
    %56 = vector.load %arg12[%c0_37, %c96_38] : memref<8x128xf32, #tpu.memory_space<vmem>>, vector<8x32xf32>
    tpu.vector_store %arg12[%c0_37, %c96_38], %55 {strides = array<i32>} : memref<8x128xf32, #tpu.memory_space<vmem>>, vector<8x32xf32>,
    %c0_39 = arith.constant 0 : index
    %c0_40 = arith.constant 0 : index
    %57 = vector.load %arg12[%c0_39, %c0_40] : memref<8x128xf32, #tpu.memory_space<vmem>>, vector<8x128xf32>
    %58 = arith.truncf %57 : vector<8x128xf32> to vector<8x128xbf16>
    %c0_41 = arith.constant 0 : index
    %c0_42 = arith.constant 0 : index
    %59 = vector.load %arg6[%c0_41, %c0_42] : memref<128x256xbf16, #tpu.memory_space<vmem>>, vector<128x256xbf16>
    %cst_43 = arith.constant dense<0.000000e+00> : vector<8x256xf32>
    %60 = tpu.matmul %58, %59, %cst_43 {dimension_numbers = #tpu.dot_dimension_numbers<[1], [0], [0], [1], [0, 0, 1, 1], [], []>} : vector<8x128xbf16>, vector<128x256xbf16>, vector<8x256xf32> -> vector<8x256xf32>
    %c0_44 = arith.constant 0 : index
    %c0_45 = arith.constant 0 : index
    %61 = vector.load %arg7[%c0_44, %c0_45] : memref<1x256xf32, #tpu.memory_space<vmem>>, vector<1x256xf32>
    %62 = vector.broadcast %61 : vector<1x256xf32> to vector<8x256xf32>
    %63 = arith.addf %60, %62 : vector<8x256xf32>
    %cst_46 = arith.constant 0.000000e+00 : f32
    %64 = vector.broadcast %cst_46 : f32 to vector<8x256xf32>
    %65 = arith.maximumf %63, %64 : vector<8x256xf32>
    %66 = arith.truncf %65 : vector<8x256xf32> to vector<8x256xbf16>
    %c0_47 = arith.constant 0 : index
    %c0_48 = arith.constant 0 : index
    %67 = vector.load %arg8[%c0_47, %c0_48] : memref<256x128xbf16, #tpu.memory_space<vmem>>, vector<256x128xbf16>
    %cst_49 = arith.constant dense<0.000000e+00> : vector<8x128xf32>
    %68 = tpu.matmul %66, %67, %cst_49 {dimension_numbers = #tpu.dot_dimension_numbers<[1], [0], [0], [1], [0, 0, 1, 1], [], []>} : vector<8x256xbf16>, vector<256x128xbf16>, vector<8x128xf32> -> vector<8x128xf32>
    %c0_50 = arith.constant 0 : index
    %c0_51 = arith.constant 0 : index
    %69 = vector.load %arg9[%c0_50, %c0_51] : memref<1x128xf32, #tpu.memory_space<vmem>>, vector<1x128xf32>
    %70 = vector.broadcast %69 : vector<1x128xf32> to vector<8x128xf32>
    %71 = arith.addf %68, %70 : vector<8x128xf32>
    %c0_52 = arith.constant 0 : index
    %c0_53 = arith.constant 0 : index
    %72 = vector.load %arg10[%c0_52, %c0_53] : memref<8x128xf32, #tpu.memory_space<vmem>>, vector<8x128xf32>
    tpu.vector_store %arg10[%c0_52, %c0_53], %71 {strides = array<i32>} : memref<8x128xf32, #tpu.memory_space<vmem>>, vector<8x128xf32>,
    return
  }
  func.func @transform_0(%arg0: i32) -> (i32, i32) {
    %c0_i32 = arith.constant 0 : i32
    %c0_i32_0 = arith.constant 0 : i32
    return %arg0, %c0_i32 : i32, i32
  }
  func.func @transform_1(%arg0: i32) -> (i32, i32) {
    %c0_i32 = arith.constant 0 : i32
    %c0_i32_0 = arith.constant 0 : i32
    %c0_i32_1 = arith.constant 0 : i32
    return %c0_i32, %c0_i32_0 : i32, i32
  }
  func.func @transform_2(%arg0: i32) -> (i32, i32) {
    %c0_i32 = arith.constant 0 : i32
    %c0_i32_0 = arith.constant 0 : i32
    %c0_i32_1 = arith.constant 0 : i32
    return %c0_i32, %c0_i32_0 : i32, i32
  }
  func.func @transform_3(%arg0: i32) -> (i32, i32) {
    %c0_i32 = arith.constant 0 : i32
    %c0_i32_0 = arith.constant 0 : i32
    %c0_i32_1 = arith.constant 0 : i32
    return %c0_i32, %c0_i32_0 : i32, i32
  }
  func.func @transform_4(%arg0: i32) -> (i32, i32) {
    %c0_i32 = arith.constant 0 : i32
    %c0_i32_0 = arith.constant 0 : i32
    %c0_i32_1 = arith.constant 0 : i32
    return %c0_i32, %c0_i32_0 : i32, i32
  }
  func.func @transform_5(%arg0: i32) -> (i32, i32) {
    %c0_i32 = arith.constant 0 : i32
    %c0_i32_0 = arith.constant 0 : i32
    %c0_i32_1 = arith.constant 0 : i32
    return %c0_i32, %c0_i32_0 : i32, i32
  }
  func.func @transform_6(%arg0: i32) -> (i32, i32) {
    %c0_i32 = arith.constant 0 : i32
    %c0_i32_0 = arith.constant 0 : i32
    %c0_i32_1 = arith.constant 0 : i32
    return %c0_i32, %c0_i32_0 : i32, i32
  }
  func.func @transform_7(%arg0: i32) -> (i32, i32) {
    %c0_i32 = arith.constant 0 : i32
    %c0_i32_0 = arith.constant 0 : i32
    %c0_i32_1 = arith.constant 0 : i32
    return %c0_i32, %c0_i32_0 : i32, i32
  }
  func.func @transform_8(%arg0: i32) -> (i32, i32) {
    %c0_i32 = arith.constant 0 : i32
    %c0_i32_0 = arith.constant 0 : i32
    %c0_i32_1 = arith.constant 0 : i32
    return %c0_i32, %c0_i32_0 : i32, i32
  }
  func.func @transform_9(%arg0: i32) -> (i32, i32) {
    %c0_i32 = arith.constant 0 : i32
    %c0_i32_0 = arith.constant 0 : i32
    return %arg0, %c0_i32 : i32, i32
  }
}

</mosaic_0001>

<llo_original>
// kernel: cnn_forward.1
$region0: #{cnn_forward.1}
  #allocation0 [shape = 'u32[]', space=smem, size = 0x4, offset = 0x4, fixed_abs, tag = 'smem constant byte address 0x4 - core index']
  #allocation1 [shape = 'u32[144,128]{1,0:T(1,128)}', space=vmem, size = 0x12000, scoped, tag = 'internal scratch']
  #allocation2 [shape = 'f32[32,256]{1,0:T(8,128)}', space=vmem, size = 0x8000, scoped, tag = 'scratch operand']
  #allocation3 [shape = 'f32[8,128]{1,0:T(8,128)}', space=vmem, size = 0x1000, scoped, tag = 'scratch operand']
  %s0 = inlined_call_operand.vmem [shape: bf16[512,256], index: 0, kind: input, shape index: {}]
  %s1 = inlined_call_operand.vmem [shape: bf16[256,16], index: 1, kind: input, shape index: {}]
  %s2 = inlined_call_operand.vmem [shape: f32[1,16], index: 2, kind: input, shape index: {}]
  %s3 = inlined_call_operand.vmem [shape: bf16[256,32], index: 3, kind: input, shape index: {}]
  %s4 = inlined_call_operand.vmem [shape: f32[1,32], index: 4, kind: input, shape index: {}]
  %s5 = inlined_call_operand.vmem [shape: bf16[128,256], index: 5, kind: input, shape index: {}]
  %s6 = inlined_call_operand.vmem [shape: f32[1,256], index: 6, kind: input, shape index: {}]
  %s7 = inlined_call_operand.vmem [shape: bf16[256,128], index: 7, kind: input, shape index: {}]
  %s8 = inlined_call_operand.vmem [shape: f32[1,128], index: 8, kind: input, shape index: {}]
  %s9 = inlined_call_operand.vmem [shape: f32[8,128], index: 9, kind: output, shape index: {}]
  %s10 = sld [smem:[#allocation0]]
  $region46: #{cnn_forward.1} parent=0
    _
  %s12 = ssub.s32 1, %s10
  %s13 = scalar_select 0, %s12, %s10
  // Predicated region
  $region2: #{cnn_forward.1} parent=0 // pred_check
    _
  $region3: #{cnn_forward.1} parent=0 // pred_check_branch
    %15 = sbr.rel (0) target = $region5
  $region4: #{cnn_forward.1} parent=0 // pred_region
    _
  $region5: #{cnn_forward.1} parent=0 // pred_fallthru
    _
  // Predicated region
  $region6: #{cnn_forward.1} parent=0 // pred_check
    _
  $region7: #{cnn_forward.1} parent=0 // pred_check_branch
    %17 = sbr.rel (0) target = $region9
  $region8: #{cnn_forward.1} parent=0 // pred_region
    _
  $region9: #{cnn_forward.1} parent=0 // pred_fallthru
    _
  // Predicated region
  $region10: #{cnn_forward.1} parent=0 // pred_check
    _
  $region11: #{cnn_forward.1} parent=0 // pred_check_branch
    %19 = sbr.rel (0) target = $region13
  $region12: #{cnn_forward.1} parent=0 // pred_region
    _
  $region13: #{cnn_forward.1} parent=0 // pred_fallthru
    _
  // Predicated region
  $region14: #{cnn_forward.1} parent=0 // pred_check
    _
  $region15: #{cnn_forward.1} parent=0 // pred_check_branch
    %21 = sbr.rel (0) target = $region17
  $region16: #{cnn_forward.1} parent=0 // pred_region
    _
  $region17: #{cnn_forward.1} parent=0 // pred_fallthru
    _
  // Predicated region
  $region18: #{cnn_forward.1} parent=0 // pred_check
    _
  $region19: #{cnn_forward.1} parent=0 // pred_check_branch
    %23 = sbr.rel (0) target = $region21
  $region20: #{cnn_forward.1} parent=0 // pred_region
    _
  $region21: #{cnn_forward.1} parent=0 // pred_fallthru
    _
  // Predicated region
  $region22: #{cnn_forward.1} parent=0 // pred_check
    _
  $region23: #{cnn_forward.1} parent=0 // pred_check_branch
    %25 = sbr.rel (0) target = $region25
  $region24: #{cnn_forward.1} parent=0 // pred_region
    _
  $region25: #{cnn_forward.1} parent=0 // pred_fallthru
    _
  // Predicated region
  $region26: #{cnn_forward.1} parent=0 // pred_check
    _
  $region27: #{cnn_forward.1} parent=0 // pred_check_branch
    %27 = sbr.rel (0) target = $region29
  $region28: #{cnn_forward.1} parent=0 // pred_region
    _
  $region29: #{cnn_forward.1} parent=0 // pred_fallthru
    _
  // Predicated region
  $region30: #{cnn_forward.1} parent=0 // pred_check
    _
  $region31: #{cnn_forward.1} parent=0 // pred_check_branch
    %29 = sbr.rel (0) target = $region33
  $region32: #{cnn_forward.1} parent=0 // pred_region
    _
  $region33: #{cnn_forward.1} parent=0 // pred_fallthru
    _
  // Predicated region
  $region34: #{cnn_forward.1} parent=0 // pred_check
    _
  $region35: #{cnn_forward.1} parent=0 // pred_check_branch
    %31 = sbr.rel (0) target = $region37
  $region36: #{cnn_forward.1} parent=0 // pred_region
    _
  $region37: #{cnn_forward.1} parent=0 // pred_fallthru
    _
  %v33 = vld [vmem:[%s0] sm:$0xff]
  %v34 = vld [vmem:[%s0 + $0x8] sm:$0xff]
  %v35 = vld [vmem:[%s0 + $0x10] sm:$0xff]
  %v36 = vld [vmem:[%s0 + $0x18] sm:$0xff]
  %v37 = vld [vmem:[%s0 + $0x20] sm:$0xff]
  %v38 = vld [vmem:[%s0 + $0x28] sm:$0xff]
  %v39 = vld [vmem:[%s0 + $0x30] sm:$0xff]
  %v40 = vld [vmem:[%s0 + $0x38] sm:$0xff]
  %v41 = vld [vmem:[%s0 + $0x40] sm:$0xff]
  %v42 = vld [vmem:[%s0 + $0x48] sm:$0xff]
  %v43 = vld [vmem:[%s0 + $0x50] sm:$0xff]
  %v44 = vld [vmem:[%s0 + $0x58] sm:$0xff]
  %v45 = vld [vmem:[%s0 + $0x60] sm:$0xff]
  %v46 = vld [vmem:[%s0 + $0x68] sm:$0xff]
  %v47 = vld [vmem:[%s0 + $0x70] sm:$0xff]
  %v48 = vld [vmem:[%s0 + $0x78] sm:$0xff]
  %v49 = vld [vmem:[%s0 + $0x80] sm:$0xff]
  %v50 = vld [vmem:[%s0 + $0x88] sm:$0xff]
  %v51 = vld [vmem:[%s0 + $0x90] sm:$0xff]
  %v52 = vld [vmem:[%s0 + $0x98] sm:$0xff]
  %v53 = vld [vmem:[%s0 + $0xa0] sm:$0xff]
  %v54 = vld [vmem:[%s0 + $0xa8] sm:$0xff]
  %v55 = vld [vmem:[%s0 + $0xb0] sm:$0xff]
  %v56 = vld [vmem:[%s0 + $0xb8] sm:$0xff]
  %v57 = vld [vmem:[%s0 + $0xc0] sm:$0xff]
  %v58 = vld [vmem:[%s0 + $0xc8] sm:$0xff]
  %v59 = vld [vmem:[%s0 + $0xd0] sm:$0xff]
  %v60 = vld [vmem:[%s0 + $0xd8] sm:$0xff]
  %v61 = vld [vmem:[%s0 + $0xe0] sm:$0xff]
  %v62 = vld [vmem:[%s0 + $0xe8] sm:$0xff]
  %v63 = vld [vmem:[%s0 + $0xf0] sm:$0xff]
  %v64 = vld [vmem:[%s0 + $0xf8] sm:$0xff]
  %v65 = vld [vmem:[%s0 + $0x100] sm:$0xff]
  %v66 = vld [vmem:[%s0 + $0x108] sm:$0xff]
  %v67 = vld [vmem:[%s0 + $0x110] sm:$0xff]
  %v68 = vld [vmem:[%s0 + $0x118] sm:$0xff]
  %v69 = vld [vmem:[%s0 + $0x120] sm:$0xff]
  %v70 = vld [vmem:[%s0 + $0x128] sm:$0xff]
  %v71 = vld [vmem:[%s0 + $0x130] sm:$0xff]
  %v72 = vld [vmem:[%s0 + $0x138] sm:$0xff]
  %v73 = vld [vmem:[%s0 + $0x140] sm:$0xff]
  %v74 = vld [vmem:[%s0 + $0x148] sm:$0xff]
  %v75 = vld [vmem:[%s0 + $0x150] sm:$0xff]
  %v76 = vld [vmem:[%s0 + $0x158] sm:$0xff]
  %v77 = vld [vmem:[%s0 + $0x160] sm:$0xff]
  %v78 = vld [vmem:[%s0 + $0x168] sm:$0xff]
  %v79 = vld [vmem:[%s0 + $0x170] sm:$0xff]
  %v80 = vld [vmem:[%s0 + $0x178] sm:$0xff]
  %v81 = vld [vmem:[%s0 + $0x180] sm:$0xff]
  %v82 = vld [vmem:[%s0 + $0x188] sm:$0xff]
  %v83 = vld [vmem:[%s0 + $0x190] sm:$0xff]
  %v84 = vld [vmem:[%s0 + $0x198] sm:$0xff]
  %v85 = vld [vmem:[%s0 + $0x1a0] sm:$0xff]
  %v86 = vld [vmem:[%s0 + $0x1a8] sm:$0xff]
  %v87 = vld [vmem:[%s0 + $0x1b0] sm:$0xff]
  %v88 = vld [vmem:[%s0 + $0x1b8] sm:$0xff]
  %v89 = vld [vmem:[%s0 + $0x1c0] sm:$0xff]
  %v90 = vld [vmem:[%s0 + $0x1c8] sm:$0xff]
  %v91 = vld [vmem:[%s0 + $0x1d0] sm:$0xff]
  %v92 = vld [vmem:[%s0 + $0x1d8] sm:$0xff]
  %v93 = vld [vmem:[%s0 + $0x1e0] sm:$0xff]
  %v94 = vld [vmem:[%s0 + $0x1e8] sm:$0xff]
  %v95 = vld [vmem:[%s0 + $0x1f0] sm:$0xff]
  %v96 = vld [vmem:[%s0 + $0x1f8] sm:$0xff]
  %v97 = vld [vmem:[%s1] sm:$0xf]
  %v98 = vld [vmem:[%s1 + $0x4] sm:$0xf]
  %v99 = vld [vmem:[%s1 + $0x8] sm:$0xf]
  %v100 = vld [vmem:[%s1 + $0xc] sm:$0xf]
  %v101 = vld [vmem:[%s1 + $0x10] sm:$0xf]
  %v102 = vld [vmem:[%s1 + $0x14] sm:$0xf]
  %v103 = vld [vmem:[%s1 + $0x18] sm:$0xf]
  %v104 = vld [vmem:[%s1 + $0x1c] sm:$0xf]
  %v105 = vld [vmem:[%s1 + $0x20] sm:$0xf]
  %v106 = vld [vmem:[%s1 + $0x24] sm:$0xf]
  %v107 = vld [vmem:[%s1 + $0x28] sm:$0xf]
  %v108 = vld [vmem:[%s1 + $0x2c] sm:$0xf]
  %v109 = vld [vmem:[%s1 + $0x30] sm:$0xf]
  %v110 = vld [vmem:[%s1 + $0x34] sm:$0xf]
  %v111 = vld [vmem:[%s1 + $0x38] sm:$0xf]
  %v112 = vld [vmem:[%s1 + $0x3c] sm:$0xf]
  %v113 = vld [vmem:[%s1 + $0x40] sm:$0xf]
  %v114 = vld [vmem:[%s1 + $0x44] sm:$0xf]
  %v115 = vld [vmem:[%s1 + $0x48] sm:$0xf]
  %v116 = vld [vmem:[%s1 + $0x4c] sm:$0xf]
  %v117 = vld [vmem:[%s1 + $0x50] sm:$0xf]
  %v118 = vld [vmem:[%s1 + $0x54] sm:$0xf]
  %v119 = vld [vmem:[%s1 + $0x58] sm:$0xf]
  %v120 = vld [vmem:[%s1 + $0x5c] sm:$0xf]
  %v121 = vld [vmem:[%s1 + $0x60] sm:$0xf]
  %v122 = vld [vmem:[%s1 + $0x64] sm:$0xf]
  %v123 = vld [vmem:[%s1 + $0x68] sm:$0xf]
  %v124 = vld [vmem:[%s1 + $0x6c] sm:$0xf]
  %v125 = vld [vmem:[%s1 + $0x70] sm:$0xf]
  %v126 = vld [vmem:[%s1 + $0x74] sm:$0xf]
  %v127 = vld [vmem:[%s1 + $0x78] sm:$0xf]
  %v128 = vld [vmem:[%s1 + $0x7c] sm:$0xf]
  %v129 = vld [vmem:[%s2] sm:$0x1]
  %v131 = vlaneseq
  %v132 = vshrl.u32 %v131, 7
  %v133 = vsub.s32 0, %v132
  %v134 = vrot.slane %v129, %v133
  %v200 = vunpack.c.l.b16 %v33
  %v201 = vunpack.c.h.b16 %v33
  %v202 = vunpack.c.l.b16 %v34
  %v203 = vunpack.c.h.b16 %v34
  %v204 = vunpack.c.l.b16 %v35
  %v205 = vunpack.c.h.b16 %v35
  %v206 = vunpack.c.l.b16 %v36
  %v207 = vunpack.c.h.b16 %v36
  %v208 = vunpack.c.l.b16 %v37
  %v209 = vunpack.c.h.b16 %v37
  %v210 = vunpack.c.l.b16 %v38
  %v211 = vunpack.c.h.b16 %v38
  %v212 = vunpack.c.l.b16 %v39
  %v213 = vunpack.c.h.b16 %v39
  %v214 = vunpack.c.l.b16 %v40
  %v215 = vunpack.c.h.b16 %v40
  %v216 = vunpack.c.l.b16 %v41
  %v217 = vunpack.c.h.b16 %v41
  %v218 = vunpack.c.l.b16 %v42
  %v219 = vunpack.c.h.b16 %v42
  %v220 = vunpack.c.l.b16 %v43
  %v221 = vunpack.c.h.b16 %v43
  %v222 = vunpack.c.l.b16 %v44
  %v223 = vunpack.c.h.b16 %v44
  %v224 = vunpack.c.l.b16 %v45
  %v225 = vunpack.c.h.b16 %v45
  %v226 = vunpack.c.l.b16 %v46
  %v227 = vunpack.c.h.b16 %v46
  %v228 = vunpack.c.l.b16 %v47
  %v229 = vunpack.c.h.b16 %v47
  %v230 = vunpack.c.l.b16 %v48
  %v231 = vunpack.c.h.b16 %v48
  %v232 = vunpack.c.l.b16 %v49
  %v233 = vunpack.c.h.b16 %v49
  %v234 = vunpack.c.l.b16 %v50
  %v235 = vunpack.c.h.b16 %v50
  %v236 = vunpack.c.l.b16 %v51
  %v237 = vunpack.c.h.b16 %v51
  %v238 = vunpack.c.l.b16 %v52
  %v239 = vunpack.c.h.b16 %v52
  %v240 = vunpack.c.l.b16 %v53
  %v241 = vunpack.c.h.b16 %v53
  %v242 = vunpack.c.l.b16 %v54
  %v243 = vunpack.c.h.b16 %v54
  %v244 = vunpack.c.l.b16 %v55
  %v245 = vunpack.c.h.b16 %v55
  %v246 = vunpack.c.l.b16 %v56
  %v247 = vunpack.c.h.b16 %v56
  %v248 = vunpack.c.l.b16 %v57
  %v249 = vunpack.c.h.b16 %v57
  %v250 = vunpack.c.l.b16 %v58
  %v251 = vunpack.c.h.b16 %v58
  %v252 = vunpack.c.l.b16 %v59
  %v253 = vunpack.c.h.b16 %v59
  %v254 = vunpack.c.l.b16 %v60
  %v255 = vunpack.c.h.b16 %v60
  %v256 = vunpack.c.l.b16 %v61
  %v257 = vunpack.c.h.b16 %v61
  %v258 = vunpack.c.l.b16 %v62
  %v259 = vunpack.c.h.b16 %v62
  %v260 = vunpack.c.l.b16 %v63
  %v261 = vunpack.c.h.b16 %v63
  %v262 = vunpack.c.l.b16 %v64
  %v263 = vunpack.c.h.b16 %v64
  %v264 = vunpack.c.l.b16 %v65
  %v265 = vunpack.c.h.b16 %v65
  %v266 = vunpack.c.l.b16 %v66
  %v267 = vunpack.c.h.b16 %v66
  %v268 = vunpack.c.l.b16 %v67
  %v269 = vunpack.c.h.b16 %v67
  %v270 = vunpack.c.l.b16 %v68
  %v271 = vunpack.c.h.b16 %v68
  %v272 = vunpack.c.l.b16 %v69
  %v273 = vunpack.c.h.b16 %v69
  %v274 = vunpack.c.l.b16 %v70
  %v275 = vunpack.c.h.b16 %v70
  %v276 = vunpack.c.l.b16 %v71
  %v277 = vunpack.c.h.b16 %v71
  %v278 = vunpack.c.l.b16 %v72
  %v279 = vunpack.c.h.b16 %v72
  %v280 = vunpack.c.l.b16 %v73
  %v281 = vunpack.c.h.b16 %v73
  %v282 = vunpack.c.l.b16 %v74
  %v283 = vunpack.c.h.b16 %v74
  %v284 = vunpack.c.l.b16 %v75
  %v285 = vunpack.c.h.b16 %v75
  %v286 = vunpack.c.l.b16 %v76
  %v287 = vunpack.c.h.b16 %v76
  %v288 = vunpack.c.l.b16 %v77
  %v289 = vunpack.c.h.b16 %v77
  %v290 = vunpack.c.l.b16 %v78
  %v291 = vunpack.c.h.b16 %v78
  %v292 = vunpack.c.l.b16 %v79
  %v293 = vunpack.c.h.b16 %v79
  %v294 = vunpack.c.l.b16 %v80
  %v295 = vunpack.c.h.b16 %v80
  %v296 = vunpack.c.l.b16 %v81
  %v297 = vunpack.c.h.b16 %v81
  %v298 = vunpack.c.l.b16 %v82
  %v299 = vunpack.c.h.b16 %v82
  %v300 = vunpack.c.l.b16 %v83
  %v301 = vunpack.c.h.b16 %v83
  %v302 = vunpack.c.l.b16 %v84
  %v303 = vunpack.c.h.b16 %v84
  %v304 = vunpack.c.l.b16 %v85
  %v305 = vunpack.c.h.b16 %v85
  %v306 = vunpack.c.l.b16 %v86
  %v307 = vunpack.c.h.b16 %v86
  %v308 = vunpack.c.l.b16 %v87
  %v309 = vunpack.c.h.b16 %v87
  %v310 = vunpack.c.l.b16 %v88
  %v311 = vunpack.c.h.b16 %v88
  %v312 = vunpack.c.l.b16 %v89
  %v313 = vunpack.c.h.b16 %v89
  %v314 = vunpack.c.l.b16 %v90
  %v315 = vunpack.c.h.b16 %v90
  %v316 = vunpack.c.l.b16 %v91
  %v317 = vunpack.c.h.b16 %v91
  %v318 = vunpack.c.l.b16 %v92
  %v319 = vunpack.c.h.b16 %v92
  %v320 = vunpack.c.l.b16 %v93
  %v321 = vunpack.c.h.b16 %v93
  %v322 = vunpack.c.l.b16 %v94
  %v323 = vunpack.c.h.b16 %v94
  %v324 = vunpack.c.l.b16 %v95
  %v325 = vunpack.c.h.b16 %v95
  %v326 = vunpack.c.l.b16 %v96
  %v327 = vunpack.c.h.b16 %v96
  %v328 = vpack.c.b16 %v202, %v200
  %v329 = vpack.c.b16 %v203, %v201
  %v330 = vpack.c.b16 %v206, %v204
  %v331 = vpack.c.b16 %v207, %v205
  %v332 = vpack.c.b16 %v210, %v208
  %v333 = vpack.c.b16 %v211, %v209
  %v334 = vpack.c.b16 %v214, %v212
  %v335 = vpack.c.b16 %v215, %v213
  %v336 = vpack.c.b16 %v218, %v216
  %v337 = vpack.c.b16 %v219, %v217
  %v338 = vpack.c.b16 %v222, %v220
  %v339 = vpack.c.b16 %v223, %v221
  %v340 = vpack.c.b16 %v226, %v224
  %v341 = vpack.c.b16 %v227, %v225
  %v342 = vpack.c.b16 %v230, %v228
  %v343 = vpack.c.b16 %v231, %v229
  %v344 = vpack.c.b16 %v234, %v232
  %v345 = vpack.c.b16 %v235, %v233
  %v346 = vpack.c.b16 %v238, %v236
  %v347 = vpack.c.b16 %v239, %v237
  %v348 = vpack.c.b16 %v242, %v240
  %v349 = vpack.c.b16 %v243, %v241
  %v350 = vpack.c.b16 %v246, %v244
  %v351 = vpack.c.b16 %v247, %v245
  %v352 = vpack.c.b16 %v250, %v248
  %v353 = vpack.c.b16 %v251, %v249
  %v354 = vpack.c.b16 %v254, %v252
  %v355 = vpack.c.b16 %v255, %v253
  %v356 = vpack.c.b16 %v258, %v256
  %v357 = vpack.c.b16 %v259, %v257
  %v358 = vpack.c.b16 %v262, %v260
  %v359 = vpack.c.b16 %v263, %v261
  %v360 = vpack.c.b16 %v266, %v264
  %v361 = vpack.c.b16 %v267, %v265
  %v362 = vpack.c.b16 %v270, %v268
  %v363 = vpack.c.b16 %v271, %v269
  %v364 = vpack.c.b16 %v274, %v272
  %v365 = vpack.c.b16 %v275, %v273
  %v366 = vpack.c.b16 %v278, %v276
  %v367 = vpack.c.b16 %v279, %v277
  %v368 = vpack.c.b16 %v282, %v280
  %v369 = vpack.c.b16 %v283, %v281
  %v370 = vpack.c.b16 %v286, %v284
  %v371 = vpack.c.b16 %v287, %v285
  %v372 = vpack.c.b16 %v290, %v288
  %v373 = vpack.c.b16 %v291, %v289
  %v374 = vpack.c.b16 %v294, %v292
  %v375 = vpack.c.b16 %v295, %v293
  %v376 = vpack.c.b16 %v298, %v296
  %v377 = vpack.c.b16 %v299, %v297
  %v378 = vpack.c.b16 %v302, %v300
  %v379 = vpack.c.b16 %v303, %v301
  %v380 = vpack.c.b16 %v306, %v304
  %v381 = vpack.c.b16 %v307, %v305
  %v382 = vpack.c.b16 %v310, %v308
  %v383 = vpack.c.b16 %v311, %v309
  %v384 = vpack.c.b16 %v314, %v312
  %v385 = vpack.c.b16 %v315, %v313
  %v386 = vpack.c.b16 %v318, %v316
  %v387 = vpack.c.b16 %v319, %v317
  %v388 = vpack.c.b16 %v322, %v320
  %v389 = vpack.c.b16 %v323, %v321
  %v390 = vpack.c.b16 %v326, %v324
  %v391 = vpack.c.b16 %v327, %v325
  %v488 = vunpack.c.l.b16 %v97
  %v489 = vunpack.c.l.b16 %v98
  %v490 = vunpack.c.l.b16 %v99
  %v491 = vunpack.c.l.b16 %v100
  %v492 = vunpack.c.l.b16 %v101
  %v493 = vunpack.c.l.b16 %v102
  %v494 = vunpack.c.l.b16 %v103
  %v495 = vunpack.c.l.b16 %v104
  %v496 = vunpack.c.l.b16 %v105
  %v497 = vunpack.c.l.b16 %v106
  %v498 = vunpack.c.l.b16 %v107
  %v499 = vunpack.c.l.b16 %v108
  %v500 = vunpack.c.l.b16 %v109
  %v501 = vunpack.c.l.b16 %v110
  %v502 = vunpack.c.l.b16 %v111
  %v503 = vunpack.c.l.b16 %v112
  %v504 = vunpack.c.l.b16 %v113
  %v505 = vunpack.c.l.b16 %v114
  %v506 = vunpack.c.l.b16 %v115
  %v507 = vunpack.c.l.b16 %v116
  %v508 = vunpack.c.l.b16 %v117
  %v509 = vunpack.c.l.b16 %v118
  %v510 = vunpack.c.l.b16 %v119
  %v511 = vunpack.c.l.b16 %v120
  %v512 = vunpack.c.l.b16 %v121
  %v513 = vunpack.c.l.b16 %v122
  %v514 = vunpack.c.l.b16 %v123
  %v515 = vunpack.c.l.b16 %v124
  %v516 = vunpack.c.l.b16 %v125
  %v517 = vunpack.c.l.b16 %v126
  %v518 = vunpack.c.l.b16 %v127
  %v519 = vunpack.c.l.b16 %v128
  %v520 = vpack.c.b16 %v489, %v488
  %v521 = vpack.c.b16 %v491, %v490
  %v522 = vpack.c.b16 %v493, %v492
  %v523 = vpack.c.b16 %v495, %v494
  %v524 = vpack.c.b16 %v497, %v496
  %v525 = vpack.c.b16 %v499, %v498
  %v526 = vpack.c.b16 %v501, %v500
  %v527 = vpack.c.b16 %v503, %v502
  %v528 = vpack.c.b16 %v505, %v504
  %v529 = vpack.c.b16 %v507, %v506
  %v530 = vpack.c.b16 %v509, %v508
  %v531 = vpack.c.b16 %v511, %v510
  %v532 = vpack.c.b16 %v513, %v512
  %v533 = vpack.c.b16 %v515, %v514
  %v534 = vpack.c.b16 %v517, %v516
  %v535 = vpack.c.b16 %v519, %v518
  %552 = vmatprep.subr.bf16.mxu0 0
  %553 = vmatpush1.bf16.msra.mxu0 %v520
  %554 = vmatprep.subr.bf16.mxu0 0
  %555 = vmatpush1.bf16.msra.mxu0 %v521
  %556 = vmatprep.subr.bf16.mxu0 0
  %557 = vmatpush1.bf16.msra.mxu0 %v522
  %558 = vmatprep.subr.bf16.mxu0 0
  %559 = vmatpush1.bf16.msra.mxu0 %v523
  %560 = vmatprep.subr.bf16.mxu0 0
  %561 = vmatpush1.bf16.msra.mxu0 %v524
  %562 = vmatprep.subr.bf16.mxu0 0
  %563 = vmatpush1.bf16.msra.mxu0 %v525
  %564 = vmatprep.subr.bf16.mxu0 0
  %565 = vmatpush1.bf16.msra.mxu0 %v526
  %566 = vmatprep.subr.bf16.mxu0 0
  %567 = vmatpush1.bf16.msra.mxu0 %v527
  %568 = vmatprep.subr.bf16.mxu0 0
  %569 = vmatpush1.bf16.msra.mxu0 %v528
  %570 = vmatprep.subr.bf16.mxu0 0
  %571 = vmatpush1.bf16.msra.mxu0 %v529
  %572 = vmatprep.subr.bf16.mxu0 0
  %573 = vmatpush1.bf16.msra.mxu0 %v530
  %574 = vmatprep.subr.bf16.mxu0 0
  %575 = vmatpush1.bf16.msra.mxu0 %v531
  %576 = vmatprep.subr.bf16.mxu0 0
  %577 = vmatpush1.bf16.msra.mxu0 %v532
  %578 = vmatprep.subr.bf16.mxu0 0
  %579 = vmatpush1.bf16.msra.mxu0 %v533
  %580 = vmatprep.subr.bf16.mxu0 0
  %581 = vmatpush1.bf16.msra.mxu0 %v534
  %582 = vmatprep.subr.bf16.mxu0 0
  %583 = vmatpush1.bf16.msra.mxu0 %v535
  %584 = vmatprep.mubr.bf16.mxu0 %v329
  %585 = vmatmul.mubr.bf16.gmra.mrb[0].mxu0 %v328
  %v586 = vpop.f32.mrb[0].mxu0
  %v587 = vadd.f32 %v134, %v586
  %v588 = vpop.f32.mrb[0].mxu0
  %v589 = vpop.f32.mrb[0].mxu0
  %v590 = vadd.f32 %v134, %v589
  %v591 = vpop.f32.mrb[0].mxu0
  %592 = vmatprep.mubr.bf16.mxu0 %v331
  %593 = vmatmul.mubr.bf16.gmra.mrb[0].mxu0 %v330
  %v594 = vpop.f32.mrb[0].mxu0
  %v595 = vadd.f32 %v134, %v594
  %v596 = vpop.f32.mrb[0].mxu0
  %v597 = vpop.f32.mrb[0].mxu0
  %v598 = vadd.f32 %v134, %v597
  %v599 = vpop.f32.mrb[0].mxu0
  %600 = vmatprep.mubr.bf16.mxu0 %v333
  %601 = vmatmul.mubr.bf16.gmra.mrb[0].mxu0 %v332
  %v602 = vpop.f32.mrb[0].mxu0
  %v603 = vadd.f32 %v134, %v602
  %v604 = vpop.f32.mrb[0].mxu0
  %v605 = vpop.f32.mrb[0].mxu0
  %v606 = vadd.f32 %v134, %v605
  %v607 = vpop.f32.mrb[0].mxu0
  %608 = vmatprep.mubr.bf16.mxu0 %v335
  %609 = vmatmul.mubr.bf16.gmra.mrb[0].mxu0 %v334
  %v610 = vpop.f32.mrb[0].mxu0
  %v611 = vadd.f32 %v134, %v610
  %v612 = vpop.f32.mrb[0].mxu0
  %v613 = vpop.f32.mrb[0].mxu0
  %v614 = vadd.f32 %v134, %v613
  %v615 = vpop.f32.mrb[0].mxu0
  %616 = vmatprep.mubr.bf16.mxu0 %v337
  %617 = vmatmul.mubr.bf16.gmra.mrb[0].mxu0 %v336
  %v618 = vpop.f32.mrb[0].mxu0
  %v619 = vadd.f32 %v134, %v618
  %v620 = vpop.f32.mrb[0].mxu0
  %v621 = vpop.f32.mrb[0].mxu0
  %v622 = vadd.f32 %v134, %v621
  %v623 = vpop.f32.mrb[0].mxu0
  %624 = vmatprep.mubr.bf16.mxu0 %v339
  %625 = vmatmul.mubr.bf16.gmra.mrb[0].mxu0 %v338
  %v626 = vpop.f32.mrb[0].mxu0
  %v627 = vadd.f32 %v134, %v626
  %v628 = vpop.f32.mrb[0].mxu0
  %v629 = vpop.f32.mrb[0].mxu0
  %v630 = vadd.f32 %v134, %v629
  %v631 = vpop.f32.mrb[0].mxu0
  %632 = vmatprep.mubr.bf16.mxu0 %v341
  %633 = vmatmul.mubr.bf16.gmra.mrb[0].mxu0 %v340
  %v634 = vpop.f32.mrb[0].mxu0
  %v635 = vadd.f32 %v134, %v634
  %v636 = vpop.f32.mrb[0].mxu0
  %v637 = vpop.f32.mrb[0].mxu0
  %v638 = vadd.f32 %v134, %v637
  %v639 = vpop.f32.mrb[0].mxu0
  %640 = vmatprep.mubr.bf16.mxu0 %v343
  %641 = vmatmul.mubr.bf16.gmra.mrb[0].mxu0 %v342
  %v642 = vpop.f32.mrb[0].mxu0
  %v643 = vadd.f32 %v134, %v642
  %v644 = vpop.f32.mrb[0].mxu0
  %v645 = vpop.f32.mrb[0].mxu0
  %v646 = vadd.f32 %v134, %v645
  %v647 = vpop.f32.mrb[0].mxu0
  %648 = vmatprep.mubr.bf16.mxu0 %v345
  %649 = vmatmul.mubr.bf16.gmra.mrb[0].mxu0 %v344
  %v650 = vpop.f32.mrb[0].mxu0
  %v651 = vadd.f32 %v134, %v650
  %v652 = vpop.f32.mrb[0].mxu0
  %v653 = vpop.f32.mrb[0].mxu0
  %v654 = vadd.f32 %v134, %v653
  %v655 = vpop.f32.mrb[0].mxu0
  %656 = vmatprep.mubr.bf16.mxu0 %v347
  %657 = vmatmul.mubr.bf16.gmra.mrb[0].mxu0 %v346
  %v658 = vpop.f32.mrb[0].mxu0
  %v659 = vadd.f32 %v134, %v658
  %v660 = vpop.f32.mrb[0].mxu0
  %v661 = vpop.f32.mrb[0].mxu0
  %v662 = vadd.f32 %v134, %v661
  %v663 = vpop.f32.mrb[0].mxu0
  %664 = vmatprep.mubr.bf16.mxu0 %v349
  %665 = vmatmul.mubr.bf16.gmra.mrb[0].mxu0 %v348
  %v666 = vpop.f32.mrb[0].mxu0
  %v667 = vadd.f32 %v134, %v666
  %v668 = vpop.f32.mrb[0].mxu0
  %v669 = vpop.f32.mrb[0].mxu0
  %v670 = vadd.f32 %v134, %v669
  %v671 = vpop.f32.mrb[0].mxu0
  %672 = vmatprep.mubr.bf16.mxu0 %v351
  %673 = vmatmul.mubr.bf16.gmra.mrb[0].mxu0 %v350
  %v674 = vpop.f32.mrb[0].mxu0
  %v675 = vadd.f32 %v134, %v674
  %v676 = vpop.f32.mrb[0].mxu0
  %v677 = vpop.f32.mrb[0].mxu0
  %v678 = vadd.f32 %v134, %v677
  %v679 = vpop.f32.mrb[0].mxu0
  %680 = vmatprep.mubr.bf16.mxu0 %v353
  %681 = vmatmul.mubr.bf16.gmra.mrb[0].mxu0 %v352
  %v682 = vpop.f32.mrb[0].mxu0
  %v683 = vadd.f32 %v134, %v682
  %v684 = vpop.f32.mrb[0].mxu0
  %v685 = vpop.f32.mrb[0].mxu0
  %v686 = vadd.f32 %v134, %v685
  %v687 = vpop.f32.mrb[0].mxu0
  %688 = vmatprep.mubr.bf16.mxu0 %v355
  %689 = vmatmul.mubr.bf16.gmra.mrb[0].mxu0 %v354
  %v690 = vpop.f32.mrb[0].mxu0
  %v691 = vadd.f32 %v134, %v690
  %v692 = vpop.f32.mrb[0].mxu0
  %v693 = vpop.f32.mrb[0].mxu0
  %v694 = vadd.f32 %v134, %v693
  %v695 = vpop.f32.mrb[0].mxu0
  %696 = vmatprep.mubr.bf16.mxu0 %v357
  %697 = vmatmul.mubr.bf16.gmra.mrb[0].mxu0 %v356
  %v698 = vpop.f32.mrb[0].mxu0
  %v699 = vadd.f32 %v134, %v698
  %v700 = vpop.f32.mrb[0].mxu0
  %v701 = vpop.f32.mrb[0].mxu0
  %v702 = vadd.f32 %v134, %v701
  %v703 = vpop.f32.mrb[0].mxu0
  %704 = vmatprep.mubr.bf16.mxu0 %v359
  %705 = vmatmul.mubr.bf16.gmra.mrb[0].mxu0 %v358
  %v706 = vpop.f32.mrb[0].mxu0
  %v707 = vadd.f32 %v134, %v706
  %v708 = vpop.f32.mrb[0].mxu0
  %v709 = vpop.f32.mrb[0].mxu0
  %v710 = vadd.f32 %v134, %v709
  %v711 = vpop.f32.mrb[0].mxu0
  %712 = vmatprep.mubr.bf16.mxu0 %v361
  %713 = vmatmul.mubr.bf16.gmra.mrb[0].mxu0 %v360
  %v714 = vpop.f32.mrb[0].mxu0
  %v715 = vadd.f32 %v134, %v714
  %v716 = vpop.f32.mrb[0].mxu0
  %v717 = vpop.f32.mrb[0].mxu0
  %v718 = vadd.f32 %v134, %v717
  %v719 = vpop.f32.mrb[0].mxu0
  %720 = vmatprep.mubr.bf16.mxu0 %v363
  %721 = vmatmul.mubr.bf16.gmra.mrb[0].mxu0 %v362
  %v722 = vpop.f32.mrb[0].mxu0
  %v723 = vadd.f32 %v134, %v722
  %v724 = vpop.f32.mrb[0].mxu0
  %v725 = vpop.f32.mrb[0].mxu0
  %v726 = vadd.f32 %v134, %v725
  %v727 = vpop.f32.mrb[0].mxu0
  %728 = vmatprep.mubr.bf16.mxu0 %v365
  %729 = vmatmul.mubr.bf16.gmra.mrb[0].mxu0 %v364
  %v730 = vpop.f32.mrb[0].mxu0
  %v731 = vadd.f32 %v134, %v730
  %v732 = vpop.f32.mrb[0].mxu0
  %v733 = vpop.f32.mrb[0].mxu0
  %v734 = vadd.f32 %v134, %v733
  %v735 = vpop.f32.mrb[0].mxu0
  %736 = vmatprep.mubr.bf16.mxu0 %v367
  %737 = vmatmul.mubr.bf16.gmra.mrb[0].mxu0 %v366
  %v738 = vpop.f32.mrb[0].mxu0
  %v739 = vadd.f32 %v134, %v738
  %v740 = vpop.f32.mrb[0].mxu0
  %v741 = vpop.f32.mrb[0].mxu0
  %v742 = vadd.f32 %v134, %v741
  %v743 = vpop.f32.mrb[0].mxu0
  %744 = vmatprep.mubr.bf16.mxu0 %v369
  %745 = vmatmul.mubr.bf16.gmra.mrb[0].mxu0 %v368
  %v746 = vpop.f32.mrb[0].mxu0
  %v747 = vadd.f32 %v134, %v746
  %v748 = vpop.f32.mrb[0].mxu0
  %v749 = vpop.f32.mrb[0].mxu0
  %v750 = vadd.f32 %v134, %v749
  %v751 = vpop.f32.mrb[0].mxu0
  %752 = vmatprep.mubr.bf16.mxu0 %v371
  %753 = vmatmul.mubr.bf16.gmra.mrb[0].mxu0 %v370
  %v754 = vpop.f32.mrb[0].mxu0
  %v755 = vadd.f32 %v134, %v754
  %v756 = vpop.f32.mrb[0].mxu0
  %v757 = vpop.f32.mrb[0].mxu0
  %v758 = vadd.f32 %v134, %v757
  %v759 = vpop.f32.mrb[0].mxu0
  %760 = vmatprep.mubr.bf16.mxu0 %v373
  %761 = vmatmul.mubr.bf16.gmra.mrb[0].mxu0 %v372
  %v762 = vpop.f32.mrb[0].mxu0
  %v763 = vadd.f32 %v134, %v762
  %v764 = vpop.f32.mrb[0].mxu0
  %v765 = vpop.f32.mrb[0].mxu0
  %v766 = vadd.f32 %v134, %v765
  %v767 = vpop.f32.mrb[0].mxu0
  %768 = vmatprep.mubr.bf16.mxu0 %v375
  %769 = vmatmul.mubr.bf16.gmra.mrb[0].mxu0 %v374
  %v770 = vpop.f32.mrb[0].mxu0
  %v771 = vadd.f32 %v134, %v770
  %v772 = vpop.f32.mrb[0].mxu0
  %v773 = vpop.f32.mrb[0].mxu0
  %v774 = vadd.f32 %v134, %v773
  %v775 = vpop.f32.mrb[0].mxu0
  %776 = vmatprep.mubr.bf16.mxu0 %v377
  %777 = vmatmul.mubr.bf16.gmra.mrb[0].mxu0 %v376
  %v778 = vpop.f32.mrb[0].mxu0
  %v779 = vadd.f32 %v134, %v778
  %v780 = vpop.f32.mrb[0].mxu0
  %v781 = vpop.f32.mrb[0].mxu0
  %v782 = vadd.f32 %v134, %v781
  %v783 = vpop.f32.mrb[0].mxu0
  %784 = vmatprep.mubr.bf16.mxu0 %v379
  %785 = vmatmul.mubr.bf16.gmra.mrb[0].mxu0 %v378
  %v786 = vpop.f32.mrb[0].mxu0
  %v787 = vadd.f32 %v134, %v786
  %v788 = vpop.f32.mrb[0].mxu0
  %v789 = vpop.f32.mrb[0].mxu0
  %v790 = vadd.f32 %v134, %v789
  %v791 = vpop.f32.mrb[0].mxu0
  %792 = vmatprep.mubr.bf16.mxu0 %v381
  %793 = vmatmul.mubr.bf16.gmra.mrb[0].mxu0 %v380
  %v794 = vpop.f32.mrb[0].mxu0
  %v795 = vadd.f32 %v134, %v794
  %v796 = vpop.f32.mrb[0].mxu0
  %v797 = vpop.f32.mrb[0].mxu0
  %v798 = vadd.f32 %v134, %v797
  %v799 = vpop.f32.mrb[0].mxu0
  %800 = vmatprep.mubr.bf16.mxu0 %v383
  %801 = vmatmul.mubr.bf16.gmra.mrb[0].mxu0 %v382
  %v802 = vpop.f32.mrb[0].mxu0
  %v803 = vadd.f32 %v134, %v802
  %v804 = vpop.f32.mrb[0].mxu0
  %v805 = vpop.f32.mrb[0].mxu0
  %v806 = vadd.f32 %v134, %v805
  %v807 = vpop.f32.mrb[0].mxu0
  %808 = vmatprep.mubr.bf16.mxu0 %v385
  %809 = vmatmul.mubr.bf16.gmra.mrb[0].mxu0 %v384
  %v810 = vpop.f32.mrb[0].mxu0
  %v811 = vadd.f32 %v134, %v810
  %v812 = vpop.f32.mrb[0].mxu0
  %v813 = vpop.f32.mrb[0].mxu0
  %v814 = vadd.f32 %v134, %v813
  %v815 = vpop.f32.mrb[0].mxu0
  %816 = vmatprep.mubr.bf16.mxu0 %v387
  %817 = vmatmul.mubr.bf16.gmra.mrb[0].mxu0 %v386
  %v818 = vpop.f32.mrb[0].mxu0
  %v819 = vadd.f32 %v134, %v818
  %v820 = vpop.f32.mrb[0].mxu0
  %v821 = vpop.f32.mrb[0].mxu0
  %v822 = vadd.f32 %v134, %v821
  %v823 = vpop.f32.mrb[0].mxu0
  %824 = vmatprep.mubr.bf16.mxu0 %v389
  %825 = vmatmul.mubr.bf16.gmra.mrb[0].mxu0 %v388
  %v826 = vpop.f32.mrb[0].mxu0
  %v827 = vadd.f32 %v134, %v826
  %v828 = vpop.f32.mrb[0].mxu0
  %v829 = vpop.f32.mrb[0].mxu0
  %v830 = vadd.f32 %v134, %v829
  %v831 = vpop.f32.mrb[0].mxu0
  %832 = vmatprep.mubr.bf16.mxu0 %v391
  %833 = vmatmul.mubr.bf16.gmra.mrb[0].mxu0 %v390
  %v834 = vpop.f32.mrb[0].mxu0
  %v835 = vadd.f32 %v134, %v834
  %v836 = vpop.f32.mrb[0].mxu0
  %v837 = vpop.f32.mrb[0].mxu0
  %v838 = vadd.f32 %v134, %v837
  %v839 = vpop.f32.mrb[0].mxu0
  %840 = vdwg.mxu0
  %v841 = vmax.f32 %v587, 0.0
  %v842 = vmax.f32 %v590, 0.0
  %v843 = vmax.f32 %v595, 0.0
  %v844 = vmax.f32 %v598, 0.0
  %v845 = vmax.f32 %v603, 0.0
  %v846 = vmax.f32 %v606, 0.0
  %v847 = vmax.f32 %v611, 0.0
  %v848 = vmax.f32 %v614, 0.0
  %v849 = vmax.f32 %v619, 0.0
  %v850 = vmax.f32 %v622, 0.0
  %v851 = vmax.f32 %v627, 0.0
  %v852 = vmax.f32 %v630, 0.0
  %v853 = vmax.f32 %v635, 0.0
  %v854 = vmax.f32 %v638, 0.0
  %v855 = vmax.f32 %v643, 0.0
  %v856 = vmax.f32 %v646, 0.0
  %v857 = vmax.f32 %v651, 0.0
  %v858 = vmax.f32 %v654, 0.0
  %v859 = vmax.f32 %v659, 0.0
  %v860 = vmax.f32 %v662, 0.0
  %v861 = vmax.f32 %v667, 0.0
  %v862 = vmax.f32 %v670, 0.0
  %v863 = vmax.f32 %v675, 0.0
  %v864 = vmax.f32 %v678, 0.0
  %v865 = vmax.f32 %v683, 0.0
  %v866 = vmax.f32 %v686, 0.0
  %v867 = vmax.f32 %v691, 0.0
  %v868 = vmax.f32 %v694, 0.0
  %v869 = vmax.f32 %v699, 0.0
  %v870 = vmax.f32 %v702, 0.0
  %v871 = vmax.f32 %v707, 0.0
  %v872 = vmax.f32 %v710, 0.0
  %v873 = vmax.f32 %v715, 0.0
  %v874 = vmax.f32 %v718, 0.0
  %v875 = vmax.f32 %v723, 0.0
  %v876 = vmax.f32 %v726, 0.0
  %v877 = vmax.f32 %v731, 0.0
  %v878 = vmax.f32 %v734, 0.0
  %v879 = vmax.f32 %v739, 0.0
  %v880 = vmax.f32 %v742, 0.0
  %v881 = vmax.f32 %v747, 0.0
  %v882 = vmax.f32 %v750, 0.0
  %v883 = vmax.f32 %v755, 0.0
  %v884 = vmax.f32 %v758, 0.0
  %v885 = vmax.f32 %v763, 0.0
  %v886 = vmax.f32 %v766, 0.0
  %v887 = vmax.f32 %v771, 0.0
  %v888 = vmax.f32 %v774, 0.0
  %v889 = vmax.f32 %v779, 0.0
  %v890 = vmax.f32 %v782, 0.0
  %v891 = vmax.f32 %v787, 0.0
  %v892 = vmax.f32 %v790, 0.0
  %v893 = vmax.f32 %v795, 0.0
  %v894 = vmax.f32 %v798, 0.0
  %v895 = vmax.f32 %v803, 0.0
  %v896 = vmax.f32 %v806, 0.0
  %v897 = vmax.f32 %v811, 0.0
  %v898 = vmax.f32 %v814, 0.0
  %v899 = vmax.f32 %v819, 0.0
  %v900 = vmax.f32 %v822, 0.0
  %v901 = vmax.f32 %v827, 0.0
  %v902 = vmax.f32 %v830, 0.0
  %v903 = vmax.f32 %v835, 0.0
  %v904 = vmax.f32 %v838, 0.0
  %vm905 = vcmask 130048
  %906 = vst.msk [vmem:[#allocation2] sm:$0xff] %vm905, %v841
  %907 = vst.msk [vmem:[#allocation2 + $0x10] sm:$0xff] %vm905, %v842
  %908 = vst.msk [vmem:[#allocation2 + $0x20] sm:$0xff] %vm905, %v843
  %909 = vst.msk [vmem:[#allocation2 + $0x30] sm:$0xff] %vm905, %v844
  %914 = vrot.lane.b32.xlu0 %v845, 16
  %v915 = vpop.permute.xlu0 %914
  %916 = vrot.lane.b32.xlu0 %v846, 16
  %v917 = vpop.permute.xlu0 %916
  %918 = vrot.lane.b32.xlu0 %v847, 16
  %v919 = vpop.permute.xlu0 %918
  %920 = vrot.lane.b32.xlu0 %v848, 16
  %v921 = vpop.permute.xlu0 %920
  %vm926 = vcmask 261248
  %927 = vst.msk [vmem:[#allocation2] sm:$0xff] %vm926, %v915
  %928 = vst.msk [vmem:[#allocation2 + $0x10] sm:$0xff] %vm926, %v917
  %929 = vst.msk [vmem:[#allocation2 + $0x20] sm:$0xff] %vm926, %v919
  %930 = vst.msk [vmem:[#allocation2 + $0x30] sm:$0xff] %vm926, %v921
  %935 = vrot.lane.b32.xlu0 %v849, 32
  %v936 = vpop.permute.xlu0 %935
  %937 = vrot.lane.b32.xlu0 %v850, 32
  %v938 = vpop.permute.xlu0 %937
  %939 = vrot.lane.b32.xlu0 %v851, 32
  %v940 = vpop.permute.xlu0 %939
  %941 = vrot.lane.b32.xlu0 %v852, 32
  %v942 = vpop.permute.xlu0 %941
  %vm947 = vcmask 392448
  %948 = vst.msk [vmem:[#allocation2] sm:$0xff] %vm947, %v936
  %949 = vst.msk [vmem:[#allocation2 + $0x10] sm:$0xff] %vm947, %v938
  %950 = vst.msk [vmem:[#allocation2 + $0x20] sm:$0xff] %vm947, %v940
  %951 = vst.msk [vmem:[#allocation2 + $0x30] sm:$0xff] %vm947, %v942
  %956 = vrot.lane.b32.xlu0 %v853, 48
  %v957 = vpop.permute.xlu0 %956
  %958 = vrot.lane.b32.xlu0 %v854, 48
  %v959 = vpop.permute.xlu0 %958
  %960 = vrot.lane.b32.xlu0 %v855, 48
  %v961 = vpop.permute.xlu0 %960
  %962 = vrot.lane.b32.xlu0 %v856, 48
  %v963 = vpop.permute.xlu0 %962
  %vm968 = vcmask 523648
  %969 = vst.msk [vmem:[#allocation2] sm:$0xff] %vm968, %v957
  %970 = vst.msk [vmem:[#allocation2 + $0x10] sm:$0xff] %vm968, %v959
  %971 = vst.msk [vmem:[#allocation2 + $0x20] sm:$0xff] %vm968, %v961
  %972 = vst.msk [vmem:[#allocation2 + $0x30] sm:$0xff] %vm968, %v963
  %977 = vrot.lane.b32.xlu0 %v857, 64
  %v978 = vpop.permute.xlu0 %977
  %979 = vrot.lane.b32.xlu0 %v858, 64
  %v980 = vpop.permute.xlu0 %979
  %981 = vrot.lane.b32.xlu0 %v859, 64
  %v982 = vpop.permute.xlu0 %981
  %983 = vrot.lane.b32.xlu0 %v860, 64
  %v984 = vpop.permute.xlu0 %983
  %vm989 = vcmask 654848
  %990 = vst.msk [vmem:[#allocation2] sm:$0xff] %vm989, %v978
  %991 = vst.msk [vmem:[#allocation2 + $0x10] sm:$0xff] %vm989, %v980
  %992 = vst.msk [vmem:[#allocation2 + $0x20] sm:$0xff] %vm989, %v982
  %993 = vst.msk [vmem:[#allocation2 + $0x30] sm:$0xff] %vm989, %v984
  %998 = vrot.lane.b32.xlu0 %v861, 80
  %v999 = vpop.permute.xlu0 %998
  %1000 = vrot.lane.b32.xlu0 %v862, 80
  %v1001 = vpop.permute.xlu0 %1000
  %1002 = vrot.lane.b32.xlu0 %v863, 80
  %v1003 = vpop.permute.xlu0 %1002
  %1004 = vrot.lane.b32.xlu0 %v864, 80
  %v1005 = vpop.permute.xlu0 %1004
  %vm1010 = vcmask 786048
  %1011 = vst.msk [vmem:[#allocation2] sm:$0xff] %vm1010, %v999
  %1012 = vst.msk [vmem:[#allocation2 + $0x10] sm:$0xff] %vm1010, %v1001
  %1013 = vst.msk [vmem:[#allocation2 + $0x20] sm:$0xff] %vm1010, %v1003
  %1014 = vst.msk [vmem:[#allocation2 + $0x30] sm:$0xff] %vm1010, %v1005
  %1019 = vrot.lane.b32.xlu0 %v865, 96
  %v1020 = vpop.permute.xlu0 %1019
  %1021 = vrot.lane.b32.xlu0 %v866, 96
  %v1022 = vpop.permute.xlu0 %1021
  %1023 = vrot.lane.b32.xlu0 %v867, 96
  %v1024 = vpop.permute.xlu0 %1023
  %1025 = vrot.lane.b32.xlu0 %v868, 96
  %v1026 = vpop.permute.xlu0 %1025
  %vm1031 = vcmask 917248
  %1032 = vst.msk [vmem:[#allocation2] sm:$0xff] %vm1031, %v1020
  %1033 = vst.msk [vmem:[#allocation2 + $0x10] sm:$0xff] %vm1031, %v1022
  %1034 = vst.msk [vmem:[#allocation2 + $0x20] sm:$0xff] %vm1031, %v1024
  %1035 = vst.msk [vmem:[#allocation2 + $0x30] sm:$0xff] %vm1031, %v1026
  %1040 = vrot.lane.b32.xlu0 %v869, 112
  %v1041 = vpop.permute.xlu0 %1040
  %1042 = vrot.lane.b32.xlu0 %v870, 112
  %v1043 = vpop.permute.xlu0 %1042
  %1044 = vrot.lane.b32.xlu0 %v871, 112
  %v1045 = vpop.permute.xlu0 %1044
  %1046 = vrot.lane.b32.xlu0 %v872, 112
  %v1047 = vpop.permute.xlu0 %1046
  %vm1052 = vcmask 1048448
  %1053 = vst.msk [vmem:[#allocation2] sm:$0xff] %vm1052, %v1041
  %1054 = vst.msk [vmem:[#allocation2 + $0x10] sm:$0xff] %vm1052, %v1043
  %1055 = vst.msk [vmem:[#allocation2 + $0x20] sm:$0xff] %vm1052, %v1045
  %1056 = vst.msk [vmem:[#allocation2 + $0x30] sm:$0xff] %vm1052, %v1047
  %1057 = vst.msk [vmem:[#allocation2 + $0x8] sm:$0xff] %vm905, %v873
  %1058 = vst.msk [vmem:[#allocation2 + $0x18] sm:$0xff] %vm905, %v874
  %1059 = vst.msk [vmem:[#allocation2 + $0x28] sm:$0xff] %vm905, %v875
  %1060 = vst.msk [vmem:[#allocation2 + $0x38] sm:$0xff] %vm905, %v876
  %1065 = vrot.lane.b32.xlu0 %v877, 16
  %v1066 = vpop.permute.xlu0 %1065
  %1067 = vrot.lane.b32.xlu0 %v878, 16
  %v1068 = vpop.permute.xlu0 %1067
  %1069 = vrot.lane.b32.xlu0 %v879, 16
  %v1070 = vpop.permute.xlu0 %1069
  %1071 = vrot.lane.b32.xlu0 %v880, 16
  %v1072 = vpop.permute.xlu0 %1071
  %1077 = vst.msk [vmem:[#allocation2 + $0x8] sm:$0xff] %vm926, %v1066
  %1078 = vst.msk [vmem:[#allocation2 + $0x18] sm:$0xff] %vm926, %v1068
  %1079 = vst.msk [vmem:[#allocation2 + $0x28] sm:$0xff] %vm926, %v1070
  %1080 = vst.msk [vmem:[#allocation2 + $0x38] sm:$0xff] %vm926, %v1072
  %1085 = vrot.lane.b32.xlu0 %v881, 32
  %v1086 = vpop.permute.xlu0 %1085
  %1087 = vrot.lane.b32.xlu0 %v882, 32
  %v1088 = vpop.permute.xlu0 %1087
  %1089 = vrot.lane.b32.xlu0 %v883, 32
  %v1090 = vpop.permute.xlu0 %1089
  %1091 = vrot.lane.b32.xlu0 %v884, 32
  %v1092 = vpop.permute.xlu0 %1091
  %1097 = vst.msk [vmem:[#allocation2 + $0x8] sm:$0xff] %vm947, %v1086
  %1098 = vst.msk [vmem:[#allocation2 + $0x18] sm:$0xff] %vm947, %v1088
  %1099 = vst.msk [vmem:[#allocation2 + $0x28] sm:$0xff] %vm947, %v1090
  %1100 = vst.msk [vmem:[#allocation2 + $0x38] sm:$0xff] %vm947, %v1092
  %1105 = vrot.lane.b32.xlu0 %v885, 48
  %v1106 = vpop.permute.xlu0 %1105
  %1107 = vrot.lane.b32.xlu0 %v886, 48
  %v1108 = vpop.permute.xlu0 %1107
  %1109 = vrot.lane.b32.xlu0 %v887, 48
  %v1110 = vpop.permute.xlu0 %1109
  %1111 = vrot.lane.b32.xlu0 %v888, 48
  %v1112 = vpop.permute.xlu0 %1111
  %1117 = vst.msk [vmem:[#allocation2 + $0x8] sm:$0xff] %vm968, %v1106
  %1118 = vst.msk [vmem:[#allocation2 + $0x18] sm:$0xff] %vm968, %v1108
  %1119 = vst.msk [vmem:[#allocation2 + $0x28] sm:$0xff] %vm968, %v1110
  %1120 = vst.msk [vmem:[#allocation2 + $0x38] sm:$0xff] %vm968, %v1112
  %1125 = vrot.lane.b32.xlu0 %v889, 64
  %v1126 = vpop.permute.xlu0 %1125
  %1127 = vrot.lane.b32.xlu0 %v890, 64
  %v1128 = vpop.permute.xlu0 %1127
  %1129 = vrot.lane.b32.xlu0 %v891, 64
  %v1130 = vpop.permute.xlu0 %1129
  %1131 = vrot.lane.b32.xlu0 %v892, 64
  %v1132 = vpop.permute.xlu0 %1131
  %1137 = vst.msk [vmem:[#allocation2 + $0x8] sm:$0xff] %vm989, %v1126
  %1138 = vst.msk [vmem:[#allocation2 + $0x18] sm:$0xff] %vm989, %v1128
  %1139 = vst.msk [vmem:[#allocation2 + $0x28] sm:$0xff] %vm989, %v1130
  %1140 = vst.msk [vmem:[#allocation2 + $0x38] sm:$0xff] %vm989, %v1132
  %1145 = vrot.lane.b32.xlu0 %v893, 80
  %v1146 = vpop.permute.xlu0 %1145
  %1147 = vrot.lane.b32.xlu0 %v894, 80
  %v1148 = vpop.permute.xlu0 %1147
  %1149 = vrot.lane.b32.xlu0 %v895, 80
  %v1150 = vpop.permute.xlu0 %1149
  %1151 = vrot.lane.b32.xlu0 %v896, 80
  %v1152 = vpop.permute.xlu0 %1151
  %1157 = vst.msk [vmem:[#allocation2 + $0x8] sm:$0xff] %vm1010, %v1146
  %1158 = vst.msk [vmem:[#allocation2 + $0x18] sm:$0xff] %vm1010, %v1148
  %1159 = vst.msk [vmem:[#allocation2 + $0x28] sm:$0xff] %vm1010, %v1150
  %1160 = vst.msk [vmem:[#allocation2 + $0x38] sm:$0xff] %vm1010, %v1152
  %1165 = vrot.lane.b32.xlu0 %v897, 96
  %v1166 = vpop.permute.xlu0 %1165
  %1167 = vrot.lane.b32.xlu0 %v898, 96
  %v1168 = vpop.permute.xlu0 %1167
  %1169 = vrot.lane.b32.xlu0 %v899, 96
  %v1170 = vpop.permute.xlu0 %1169
  %1171 = vrot.lane.b32.xlu0 %v900, 96
  %v1172 = vpop.permute.xlu0 %1171
  %1177 = vst.msk [vmem:[#allocation2 + $0x8] sm:$0xff] %vm1031, %v1166
  %1178 = vst.msk [vmem:[#allocation2 + $0x18] sm:$0xff] %vm1031, %v1168
  %1179 = vst.msk [vmem:[#allocation2 + $0x28] sm:$0xff] %vm1031, %v1170
  %1180 = vst.msk [vmem:[#allocation2 + $0x38] sm:$0xff] %vm1031, %v1172
  %1185 = vrot.lane.b32.xlu0 %v901, 112
  %v1186 = vpop.permute.xlu0 %1185
  %1187 = vrot.lane.b32.xlu0 %v902, 112
  %v1188 = vpop.permute.xlu0 %1187
  %1189 = vrot.lane.b32.xlu0 %v903, 112
  %v1190 = vpop.permute.xlu0 %1189
  %1191 = vrot.lane.b32.xlu0 %v904, 112
  %v1192 = vpop.permute.xlu0 %1191
  %1197 = vst.msk [vmem:[#allocation2 + $0x8] sm:$0xff] %vm1052, %v1186
  %1198 = vst.msk [vmem:[#allocation2 + $0x18] sm:$0xff] %vm1052, %v1188
  %1199 = vst.msk [vmem:[#allocation2 + $0x28] sm:$0xff] %vm1052, %v1190
  %1200 = vst.msk [vmem:[#allocation2 + $0x38] sm:$0xff] %vm1052, %v1192
  %v1201 = vld [vmem:[#allocation2] sm:$0xff]
  %v1202 = vld [vmem:[#allocation2 + $0x8] sm:$0xff]
  %v1203 = vld [vmem:[#allocation2 + $0x10] sm:$0xff]
  %v1204 = vld [vmem:[#allocation2 + $0x18] sm:$0xff]
  %v1205 = vld [vmem:[#allocation2 + $0x20] sm:$0xff]
  %v1206 = vld [vmem:[#allocation2 + $0x28] sm:$0xff]
  %v1207 = vld [vmem:[#allocation2 + $0x30] sm:$0xff]
  %v1208 = vld [vmem:[#allocation2 + $0x38] sm:$0xff]
  %v1209 = vpack.c.bf16 %v1203, %v1201
  %v1210 = vpack.c.bf16 %v1204, %v1202
  %v1211 = vpack.c.bf16 %v1207, %v1205
  %v1212 = vpack.c.bf16 %v1208, %v1206
  %v1213 = vld [vmem:[%s3] sm:$0xf]
  %v1214 = vld [vmem:[%s3 + $0x4] sm:$0xf]
  %v1215 = vld [vmem:[%s3 + $0x8] sm:$0xf]
  %v1216 = vld [vmem:[%s3 + $0xc] sm:$0xf]
  %v1217 = vld [vmem:[%s3 + $0x10] sm:$0xf]
  %v1218 = vld [vmem:[%s3 + $0x14] sm:$0xf]
  %v1219 = vld [vmem:[%s3 + $0x18] sm:$0xf]
  %v1220 = vld [vmem:[%s3 + $0x1c] sm:$0xf]
  %v1221 = vld [vmem:[%s3 + $0x20] sm:$0xf]
  %v1222 = vld [vmem:[%s3 + $0x24] sm:$0xf]
  %v1223 = vld [vmem:[%s3 + $0x28] sm:$0xf]
  %v1224 = vld [vmem:[%s3 + $0x2c] sm:$0xf]
  %v1225 = vld [vmem:[%s3 + $0x30] sm:$0xf]
  %v1226 = vld [vmem:[%s3 + $0x34] sm:$0xf]
  %v1227 = vld [vmem:[%s3 + $0x38] sm:$0xf]
  %v1228 = vld [vmem:[%s3 + $0x3c] sm:$0xf]
  %v1229 = vld [vmem:[%s3 + $0x40] sm:$0xf]
  %v1230 = vld [vmem:[%s3 + $0x44] sm:$0xf]
  %v1231 = vld [vmem:[%s3 + $0x48] sm:$0xf]
  %v1232 = vld [vmem:[%s3 + $0x4c] sm:$0xf]
  %v1233 = vld [vmem:[%s3 + $0x50] sm:$0xf]
  %v1234 = vld [vmem:[%s3 + $0x54] sm:$0xf]
  %v1235 = vld [vmem:[%s3 + $0x58] sm:$0xf]
  %v1236 = vld [vmem:[%s3 + $0x5c] sm:$0xf]
  %v1237 = vld [vmem:[%s3 + $0x60] sm:$0xf]
  %v1238 = vld [vmem:[%s3 + $0x64] sm:$0xf]
  %v1239 = vld [vmem:[%s3 + $0x68] sm:$0xf]
  %v1240 = vld [vmem:[%s3 + $0x6c] sm:$0xf]
  %v1241 = vld [vmem:[%s3 + $0x70] sm:$0xf]
  %v1242 = vld [vmem:[%s3 + $0x74] sm:$0xf]
  %v1243 = vld [vmem:[%s3 + $0x78] sm:$0xf]
  %v1244 = vld [vmem:[%s3 + $0x7c] sm:$0xf]
  %v1245 = vld [vmem:[%s4] sm:$0x1]
  %v1247 = vlaneseq
  %v1248 = vshrl.u32 %v1247, 7
  %v1249 = vsub.s32 0, %v1248
  %v1250 = vrot.slane %v1245, %v1249
  %v1284 = vunpack.c.l.b16 %v1213
  %v1285 = vunpack.c.l.b16 %v1214
  %v1286 = vunpack.c.l.b16 %v1215
  %v1287 = vunpack.c.l.b16 %v1216
  %v1288 = vunpack.c.l.b16 %v1217
  %v1289 = vunpack.c.l.b16 %v1218
  %v1290 = vunpack.c.l.b16 %v1219
  %v1291 = vunpack.c.l.b16 %v1220
  %v1292 = vunpack.c.l.b16 %v1221
  %v1293 = vunpack.c.l.b16 %v1222
  %v1294 = vunpack.c.l.b16 %v1223
  %v1295 = vunpack.c.l.b16 %v1224
  %v1296 = vunpack.c.l.b16 %v1225
  %v1297 = vunpack.c.l.b16 %v1226
  %v1298 = vunpack.c.l.b16 %v1227
  %v1299 = vunpack.c.l.b16 %v1228
  %v1300 = vunpack.c.l.b16 %v1229
  %v1301 = vunpack.c.l.b16 %v1230
  %v1302 = vunpack.c.l.b16 %v1231
  %v1303 = vunpack.c.l.b16 %v1232
  %v1304 = vunpack.c.l.b16 %v1233
  %v1305 = vunpack.c.l.b16 %v1234
  %v1306 = vunpack.c.l.b16 %v1235
  %v1307 = vunpack.c.l.b16 %v1236
  %v1308 = vunpack.c.l.b16 %v1237
  %v1309 = vunpack.c.l.b16 %v1238
  %v1310 = vunpack.c.l.b16 %v1239
  %v1311 = vunpack.c.l.b16 %v1240
  %v1312 = vunpack.c.l.b16 %v1241
  %v1313 = vunpack.c.l.b16 %v1242
  %v1314 = vunpack.c.l.b16 %v1243
  %v1315 = vunpack.c.l.b16 %v1244
  %v1316 = vpack.c.b16 %v1285, %v1284
  %v1317 = vpack.c.b16 %v1287, %v1286
  %v1318 = vpack.c.b16 %v1289, %v1288
  %v1319 = vpack.c.b16 %v1291, %v1290
  %v1320 = vpack.c.b16 %v1293, %v1292
  %v1321 = vpack.c.b16 %v1295, %v1294
  %v1322 = vpack.c.b16 %v1297, %v1296
  %v1323 = vpack.c.b16 %v1299, %v1298
  %v1324 = vpack.c.b16 %v1301, %v1300
  %v1325 = vpack.c.b16 %v1303, %v1302
  %v1326 = vpack.c.b16 %v1305, %v1304
  %v1327 = vpack.c.b16 %v1307, %v1306
  %v1328 = vpack.c.b16 %v1309, %v1308
  %v1329 = vpack.c.b16 %v1311, %v1310
  %v1330 = vpack.c.b16 %v1313, %v1312
  %v1331 = vpack.c.b16 %v1315, %v1314
  %1348 = vmatprep.subr.bf16.mxu0 0
  %1349 = vmatpush1.bf16.msra.mxu0 %v1316
  %1350 = vmatprep.subr.bf16.mxu0 0
  %1351 = vmatpush1.bf16.msra.mxu0 %v1317
  %1352 = vmatprep.subr.bf16.mxu0 0
  %1353 = vmatpush1.bf16.msra.mxu0 %v1318
  %1354 = vmatprep.subr.bf16.mxu0 0
  %1355 = vmatpush1.bf16.msra.mxu0 %v1319
  %1356 = vmatprep.subr.bf16.mxu0 0
  %1357 = vmatpush1.bf16.msra.mxu0 %v1320
  %1358 = vmatprep.subr.bf16.mxu0 0
  %1359 = vmatpush1.bf16.msra.mxu0 %v1321
  %1360 = vmatprep.subr.bf16.mxu0 0
  %1361 = vmatpush1.bf16.msra.mxu0 %v1322
  %1362 = vmatprep.subr.bf16.mxu0 0
  %1363 = vmatpush1.bf16.msra.mxu0 %v1323
  %1364 = vmatprep.subr.bf16.mxu0 0
  %1365 = vmatpush1.bf16.msra.mxu0 %v1324
  %1366 = vmatprep.subr.bf16.mxu0 0
  %1367 = vmatpush1.bf16.msra.mxu0 %v1325
  %1368 = vmatprep.subr.bf16.mxu0 0
  %1369 = vmatpush1.bf16.msra.mxu0 %v1326
  %1370 = vmatprep.subr.bf16.mxu0 0
  %1371 = vmatpush1.bf16.msra.mxu0 %v1327
  %1372 = vmatprep.subr.bf16.mxu0 0
  %1373 = vmatpush1.bf16.msra.mxu0 %v1328
  %1374 = vmatprep.subr.bf16.mxu0 0
  %1375 = vmatpush1.bf16.msra.mxu0 %v1329
  %1376 = vmatprep.subr.bf16.mxu0 0
  %1377 = vmatpush1.bf16.msra.mxu0 %v1330
  %1378 = vmatprep.subr.bf16.mxu0 0
  %1379 = vmatpush1.bf16.msra.mxu0 %v1331
  %1380 = vmatprep.mubr.bf16.mxu0 %v1210
  %1381 = vmatmul.mubr.bf16.gmra.mrb[0].mxu0 %v1209
  %v1382 = vpop.f32.mrb[0].mxu0
  %v1383 = vadd.f32 %v1250, %v1382
  %v1384 = vpop.f32.mrb[0].mxu0
  %v1385 = vpop.f32.mrb[0].mxu0
  %v1386 = vadd.f32 %v1250, %v1385
  %v1387 = vpop.f32.mrb[0].mxu0
  %1388 = vmatprep.mubr.bf16.mxu0 %v1212
  %1389 = vmatmul.mubr.bf16.gmra.mrb[0].mxu0 %v1211
  %v1390 = vpop.f32.mrb[0].mxu0
  %v1391 = vadd.f32 %v1250, %v1390
  %v1392 = vpop.f32.mrb[0].mxu0
  %v1393 = vpop.f32.mrb[0].mxu0
  %v1394 = vadd.f32 %v1250, %v1393
  %v1395 = vpop.f32.mrb[0].mxu0
  %1396 = vdwg.mxu0
  %v1397 = vmax.f32 %v1383, 0.0
  %v1398 = vmax.f32 %v1386, 0.0
  %v1399 = vmax.f32 %v1391, 0.0
  %v1400 = vmax.f32 %v1394, 0.0
  %vm1401 = vcmask 261120
  %1402 = vst.msk [vmem:[#allocation3] sm:$0xff] %vm1401, %v1397
  %1404 = vrot.lane.b32.xlu0 %v1398, 32
  %v1405 = vpop.permute.xlu0 %1404
  %vm1407 = vcmask 523520
  %1408 = vst.msk [vmem:[#allocation3] sm:$0xff] %vm1407, %v1405
  %1410 = vrot.lane.b32.xlu0 %v1399, 64
  %v1411 = vpop.permute.xlu0 %1410
  %vm1413 = vcmask 785920
  %1414 = vst.msk [vmem:[#allocation3] sm:$0xff] %vm1413, %v1411
  %1416 = vrot.lane.b32.xlu0 %v1400, 96
  %v1417 = vpop.permute.xlu0 %1416
  %vm1419 = vcmask 1048320
  %1420 = vst.msk [vmem:[#allocation3] sm:$0xff] %vm1419, %v1417
  %v1421 = vld [vmem:[#allocation3] sm:$0xff]
  %v1422 = vpack.c.bf16 %v1421, %v1421
  %v1423 = vld [vmem:[%s5] sm:$0xff]
  %v1424 = vld [vmem:[%s5 + $0x8] sm:$0xff]
  %v1425 = vld [vmem:[%s5 + $0x10] sm:$0xff]
  %v1426 = vld [vmem:[%s5 + $0x18] sm:$0xff]
  %v1427 = vld [vmem:[%s5 + $0x20] sm:$0xff]
  %v1428 = vld [vmem:[%s5 + $0x28] sm:$0xff]
  %v1429 = vld [vmem:[%s5 + $0x30] sm:$0xff]
  %v1430 = vld [vmem:[%s5 + $0x38] sm:$0xff]
  %v1431 = vld [vmem:[%s5 + $0x40] sm:$0xff]
  %v1432 = vld [vmem:[%s5 + $0x48] sm:$0xff]
  %v1433 = vld [vmem:[%s5 + $0x50] sm:$0xff]
  %v1434 = vld [vmem:[%s5 + $0x58] sm:$0xff]
  %v1435 = vld [vmem:[%s5 + $0x60] sm:$0xff]
  %v1436 = vld [vmem:[%s5 + $0x68] sm:$0xff]
  %v1437 = vld [vmem:[%s5 + $0x70] sm:$0xff]
  %v1438 = vld [vmem:[%s5 + $0x78] sm:$0xff]
  %v1439 = vld [vmem:[%s6] sm:$0x3]
  %v1441 = vlaneseq
  %v1442 = vshrl.u32 %v1441, 7
  %v1443 = vsub.s32 0, %v1442
  %v1444 = vrot.slane %v1439, %v1443
  %v1445 = vlaneseq
  %v1446 = vshrl.u32 %v1445, 7
  %v1447 = vsub.s32 1, %v1446
  %v1448 = vrot.slane %v1439, %v1447
  %v1467 = vunpack.c.l.b16 %v1423
  %v1468 = vunpack.c.h.b16 %v1423
  %v1469 = vunpack.c.l.b16 %v1424
  %v1470 = vunpack.c.h.b16 %v1424
  %v1471 = vunpack.c.l.b16 %v1425
  %v1472 = vunpack.c.h.b16 %v1425
  %v1473 = vunpack.c.l.b16 %v1426
  %v1474 = vunpack.c.h.b16 %v1426
  %v1475 = vunpack.c.l.b16 %v1427
  %v1476 = vunpack.c.h.b16 %v1427
  %v1477 = vunpack.c.l.b16 %v1428
  %v1478 = vunpack.c.h.b16 %v1428
  %v1479 = vunpack.c.l.b16 %v1429
  %v1480 = vunpack.c.h.b16 %v1429
  %v1481 = vunpack.c.l.b16 %v1430
  %v1482 = vunpack.c.h.b16 %v1430
  %v1483 = vunpack.c.l.b16 %v1431
  %v1484 = vunpack.c.h.b16 %v1431
  %v1485 = vunpack.c.l.b16 %v1432
  %v1486 = vunpack.c.h.b16 %v1432
  %v1487 = vunpack.c.l.b16 %v1433
  %v1488 = vunpack.c.h.b16 %v1433
  %v1489 = vunpack.c.l.b16 %v1434
  %v1490 = vunpack.c.h.b16 %v1434
  %v1491 = vunpack.c.l.b16 %v1435
  %v1492 = vunpack.c.h.b16 %v1435
  %v1493 = vunpack.c.l.b16 %v1436
  %v1494 = vunpack.c.h.b16 %v1436
  %v1495 = vunpack.c.l.b16 %v1437
  %v1496 = vunpack.c.h.b16 %v1437
  %v1497 = vunpack.c.l.b16 %v1438
  %v1498 = vunpack.c.h.b16 %v1438
  %v1499 = vpack.c.b16 %v1469, %v1467
  %v1500 = vpack.c.b16 %v1470, %v1468
  %v1501 = vpack.c.b16 %v1473, %v1471
  %v1502 = vpack.c.b16 %v1474, %v1472
  %v1503 = vpack.c.b16 %v1477, %v1475
  %v1504 = vpack.c.b16 %v1478, %v1476
  %v1505 = vpack.c.b16 %v1481, %v1479
  %v1506 = vpack.c.b16 %v1482, %v1480
  %v1507 = vpack.c.b16 %v1485, %v1483
  %v1508 = vpack.c.b16 %v1486, %v1484
  %v1509 = vpack.c.b16 %v1489, %v1487
  %v1510 = vpack.c.b16 %v1490, %v1488
  %v1511 = vpack.c.b16 %v1493, %v1491
  %v1512 = vpack.c.b16 %v1494, %v1492
  %v1513 = vpack.c.b16 %v1497, %v1495
  %v1514 = vpack.c.b16 %v1498, %v1496
  %1531 = vmatprep.subr.bf16.mxu0 %v1500
  %1532 = vmatpush1.bf16.msra.mxu0 %v1499
  %1533 = vmatprep.subr.bf16.mxu0 %v1502
  %1534 = vmatpush1.bf16.msra.mxu0 %v1501
  %1535 = vmatprep.subr.bf16.mxu0 %v1504
  %1536 = vmatpush1.bf16.msra.mxu0 %v1503
  %1537 = vmatprep.subr.bf16.mxu0 %v1506
  %1538 = vmatpush1.bf16.msra.mxu0 %v1505
  %1539 = vmatprep.subr.bf16.mxu0 %v1508
  %1540 = vmatpush1.bf16.msra.mxu0 %v1507
  %1541 = vmatprep.subr.bf16.mxu0 %v1510
  %1542 = vmatpush1.bf16.msra.mxu0 %v1509
  %1543 = vmatprep.subr.bf16.mxu0 %v1512
  %1544 = vmatpush1.bf16.msra.mxu0 %v1511
  %1545 = vmatprep.subr.bf16.mxu0 %v1514
  %1546 = vmatpush1.bf16.msra.mxu0 %v1513
  %1547 = vmatprep.subr.bf16.mxu0 0
  %1548 = vmatpush1.bf16.msra.mxu0 0
  %1549 = vmatprep.subr.bf16.mxu0 0
  %1550 = vmatpush1.bf16.msra.mxu0 0
  %1551 = vmatprep.subr.bf16.mxu0 0
  %1552 = vmatpush1.bf16.msra.mxu0 0
  %1553 = vmatprep.subr.bf16.mxu0 0
  %1554 = vmatpush1.bf16.msra.mxu0 0
  %1555 = vmatprep.subr.bf16.mxu0 0
  %1556 = vmatpush1.bf16.msra.mxu0 0
  %1557 = vmatprep.subr.bf16.mxu0 0
  %1558 = vmatpush1.bf16.msra.mxu0 0
  %1559 = vmatprep.subr.bf16.mxu0 0
  %1560 = vmatpush1.bf16.msra.mxu0 0
  %1561 = vmatprep.subr.bf16.mxu0 0
  %1562 = vmatpush1.bf16.msra.mxu0 0
  %1563 = vmatprep.mubr.bf16.mxu0 0
  %1564 = vmatmul.mubr.bf16.gmra.mrb[0].mxu0 %v1422
  %v1565 = vpop.f32.mrb[0].mxu0
  %v1566 = vadd.f32 %v1444, %v1565
  %v1567 = vpop.f32.mrb[0].mxu0
  %v1568 = vadd.f32 %v1448, %v1567
  %v1569 = vpop.f32.mrb[0].mxu0
  %v1570 = vpop.f32.mrb[0].mxu0
  %1571 = vdwg.mxu0
  %v1572 = vmax.f32 %v1566, 0.0
  %v1573 = vmax.f32 %v1568, 0.0
  %v1574 = vpack.c.bf16 %v1572, %v1572
  %v1575 = vpack.c.bf16 %v1573, %v1573
  %v1576 = vld [vmem:[%s7] sm:$0xf]
  %v1577 = vld [vmem:[%s7 + $0x4] sm:$0xf]
  %v1578 = vld [vmem:[%s7 + $0x8] sm:$0xf]
  %v1579 = vld [vmem:[%s7 + $0xc] sm:$0xf]
  %v1580 = vld [vmem:[%s7 + $0x10] sm:$0xf]
  %v1581 = vld [vmem:[%s7 + $0x14] sm:$0xf]
  %v1582 = vld [vmem:[%s7 + $0x18] sm:$0xf]
  %v1583 = vld [vmem:[%s7 + $0x1c] sm:$0xf]
  %v1584 = vld [vmem:[%s7 + $0x20] sm:$0xf]
  %v1585 = vld [vmem:[%s7 + $0x24] sm:$0xf]
  %v1586 = vld [vmem:[%s7 + $0x28] sm:$0xf]
  %v1587 = vld [vmem:[%s7 + $0x2c] sm:$0xf]
  %v1588 = vld [vmem:[%s7 + $0x30] sm:$0xf]
  %v1589 = vld [vmem:[%s7 + $0x34] sm:$0xf]
  %v1590 = vld [vmem:[%s7 + $0x38] sm:$0xf]
  %v1591 = vld [vmem:[%s7 + $0x3c] sm:$0xf]
  %v1592 = vld [vmem:[%s7 + $0x40] sm:$0xf]
  %v1593 = vld [vmem:[%s7 + $0x44] sm:$0xf]
  %v1594 = vld [vmem:[%s7 + $0x48] sm:$0xf]
  %v1595 = vld [vmem:[%s7 + $0x4c] sm:$0xf]
  %v1596 = vld [vmem:[%s7 + $0x50] sm:$0xf]
  %v1597 = vld [vmem:[%s7 + $0x54] sm:$0xf]
  %v1598 = vld [vmem:[%s7 + $0x58] sm:$0xf]
  %v1599 = vld [vmem:[%s7 + $0x5c] sm:$0xf]
  %v1600 = vld [vmem:[%s7 + $0x60] sm:$0xf]
  %v1601 = vld [vmem:[%s7 + $0x64] sm:$0xf]
  %v1602 = vld [vmem:[%s7 + $0x68] sm:$0xf]
  %v1603 = vld [vmem:[%s7 + $0x6c] sm:$0xf]
  %v1604 = vld [vmem:[%s7 + $0x70] sm:$0xf]
  %v1605 = vld [vmem:[%s7 + $0x74] sm:$0xf]
  %v1606 = vld [vmem:[%s7 + $0x78] sm:$0xf]
  %v1607 = vld [vmem:[%s7 + $0x7c] sm:$0xf]
  %v1608 = vld [vmem:[%s8] sm:$0x1]
  %v1610 = vlaneseq
  %v1611 = vshrl.u32 %v1610, 7
  %v1612 = vsub.s32 0, %v1611
  %v1613 = vrot.slane %v1608, %v1612
  %v1647 = vunpack.c.l.b16 %v1576
  %v1648 = vunpack.c.l.b16 %v1577
  %v1649 = vunpack.c.l.b16 %v1578
  %v1650 = vunpack.c.l.b16 %v1579
  %v1651 = vunpack.c.l.b16 %v1580
  %v1652 = vunpack.c.l.b16 %v1581
  %v1653 = vunpack.c.l.b16 %v1582
  %v1654 = vunpack.c.l.b16 %v1583
  %v1655 = vunpack.c.l.b16 %v1584
  %v1656 = vunpack.c.l.b16 %v1585
  %v1657 = vunpack.c.l.b16 %v1586
  %v1658 = vunpack.c.l.b16 %v1587
  %v1659 = vunpack.c.l.b16 %v1588
  %v1660 = vunpack.c.l.b16 %v1589
  %v1661 = vunpack.c.l.b16 %v1590
  %v1662 = vunpack.c.l.b16 %v1591
  %v1663 = vunpack.c.l.b16 %v1592
  %v1664 = vunpack.c.l.b16 %v1593
  %v1665 = vunpack.c.l.b16 %v1594
  %v1666 = vunpack.c.l.b16 %v1595
  %v1667 = vunpack.c.l.b16 %v1596
  %v1668 = vunpack.c.l.b16 %v1597
  %v1669 = vunpack.c.l.b16 %v1598
  %v1670 = vunpack.c.l.b16 %v1599
  %v1671 = vunpack.c.l.b16 %v1600
  %v1672 = vunpack.c.l.b16 %v1601
  %v1673 = vunpack.c.l.b16 %v1602
  %v1674 = vunpack.c.l.b16 %v1603
  %v1675 = vunpack.c.l.b16 %v1604
  %v1676 = vunpack.c.l.b16 %v1605
  %v1677 = vunpack.c.l.b16 %v1606
  %v1678 = vunpack.c.l.b16 %v1607
  %v1679 = vpack.c.b16 %v1648, %v1647
  %v1680 = vpack.c.b16 %v1650, %v1649
  %v1681 = vpack.c.b16 %v1652, %v1651
  %v1682 = vpack.c.b16 %v1654, %v1653
  %v1683 = vpack.c.b16 %v1656, %v1655
  %v1684 = vpack.c.b16 %v1658, %v1657
  %v1685 = vpack.c.b16 %v1660, %v1659
  %v1686 = vpack.c.b16 %v1662, %v1661
  %v1687 = vpack.c.b16 %v1664, %v1663
  %v1688 = vpack.c.b16 %v1666, %v1665
  %v1689 = vpack.c.b16 %v1668, %v1667
  %v1690 = vpack.c.b16 %v1670, %v1669
  %v1691 = vpack.c.b16 %v1672, %v1671
  %v1692 = vpack.c.b16 %v1674, %v1673
  %v1693 = vpack.c.b16 %v1676, %v1675
  %v1694 = vpack.c.b16 %v1678, %v1677
  %1711 = vmatprep.subr.bf16.mxu0 0
  %1712 = vmatpush1.bf16.msra.mxu0 %v1679
  %1713 = vmatprep.subr.bf16.mxu0 0
  %1714 = vmatpush1.bf16.msra.mxu0 %v1680
  %1715 = vmatprep.subr.bf16.mxu0 0
  %1716 = vmatpush1.bf16.msra.mxu0 %v1681
  %1717 = vmatprep.subr.bf16.mxu0 0
  %1718 = vmatpush1.bf16.msra.mxu0 %v1682
  %1719 = vmatprep.subr.bf16.mxu0 0
  %1720 = vmatpush1.bf16.msra.mxu0 %v1683
  %1721 = vmatprep.subr.bf16.mxu0 0
  %1722 = vmatpush1.bf16.msra.mxu0 %v1684
  %1723 = vmatprep.subr.bf16.mxu0 0
  %1724 = vmatpush1.bf16.msra.mxu0 %v1685
  %1725 = vmatprep.subr.bf16.mxu0 0
  %1726 = vmatpush1.bf16.msra.mxu0 %v1686
  %1727 = vmatprep.subr.bf16.mxu0 0
  %1728 = vmatpush1.bf16.msra.mxu0 %v1687
  %1729 = vmatprep.subr.bf16.mxu0 0
  %1730 = vmatpush1.bf16.msra.mxu0 %v1688
  %1731 = vmatprep.subr.bf16.mxu0 0
  %1732 = vmatpush1.bf16.msra.mxu0 %v1689
  %1733 = vmatprep.subr.bf16.mxu0 0
  %1734 = vmatpush1.bf16.msra.mxu0 %v1690
  %1735 = vmatprep.subr.bf16.mxu0 0
  %1736 = vmatpush1.bf16.msra.mxu0 %v1691
  %1737 = vmatprep.subr.bf16.mxu0 0
  %1738 = vmatpush1.bf16.msra.mxu0 %v1692
  %1739 = vmatprep.subr.bf16.mxu0 0
  %1740 = vmatpush1.bf16.msra.mxu0 %v1693
  %1741 = vmatprep.subr.bf16.mxu0 0
  %1742 = vmatpush1.bf16.msra.mxu0 %v1694
  %1743 = vmatprep.mubr.bf16.mxu0 %v1575
  %1744 = vmatmul.mubr.bf16.gmra.mrb[0].mxu0 %v1574
  %v1745 = vpop.f32.mrb[0].mxu0
  %v1746 = vadd.f32 %v1613, %v1745
  %v1747 = vpop.f32.mrb[0].mxu0
  %v1748 = vpop.f32.mrb[0].mxu0
  %v1749 = vpop.f32.mrb[0].mxu0
  %1750 = vdwg.mxu0
  %1751 = vst [vmem:[%s9] sm:$0xff] %v1746
  // Predicated region
  $region38: #{cnn_forward.1} parent=0 // pred_check
    _
  $region39: #{cnn_forward.1} parent=0 // pred_check_branch
    %1753 = sbr.rel (0) target = $region41
  $region40: #{cnn_forward.1} parent=0 // pred_region
    _
  $region41: #{cnn_forward.1} parent=0 // pred_fallthru
    _
  // Predicated region
  $region42: #{cnn_forward.1} parent=0 // pred_check
    _
  $region43: #{cnn_forward.1} parent=0 // pred_check_branch
    %1755 = sbr.rel (0) target = $region45
  $region44: #{cnn_forward.1} parent=0 // pred_region
    _
  $region45: #{cnn_forward.1} parent=0 // pred_fallthru
    _

</llo_original>
